<compile_context>
chip_gen: v7x
topology: tpu7x:2x2x1
jax: 0.10.0
libtpu: 0.0.40
codegen_flags: <defaults>
</compile_context>

<pallas_src>
import math
from typing import Union

import numpy as np
import jax
import jax.numpy as jnp
from jax.experimental import pallas as pl
from jax.experimental.pallas import tpu as pltpu


# ----------------------------- Pallas kernel -------------------------------

def _affine_kernel(x_ref, scale_ref, offset_ref, o_ref):
    """y = x * scale + offset, stats broadcast from a (1, td) row."""
    x = x_ref[...].astype(jnp.float32)            # f32 in-register compute
    y = x * scale_ref[...] + offset_ref[...]      # one FMA per element
    o_ref[...] = y.astype(o_ref.dtype)


# ------------------------------ sizing helpers ------------------------------

_SMALL_BYPASS_ELEMS = 64 * 1024        # below this, skip Pallas entirely
_MIN_SPLIT_BYTES = 2 * 1024 * 1024     # above this, force >= 2 batch blocks


def _round_up(v: int, m: int) -> int:
    return -(-v // m) * m


def _vmem_caps():
    """(per-buffer block cap in bytes, physical VMEM capacity in bytes)."""
    try:
        vmem = int(pltpu.get_tpu_info().vmem_capacity_bytes)
    except Exception:
        vmem = 64 * 1024 * 1024        # conservative (v7x-sized) fallback
    if vmem <= 64 * 1024 * 1024:       # v7x: 64 MiB VMEM -> ~8 MiB blocks
        per_buf = 8 * 1024 * 1024
    else:                              # v5e/v6e: 128 MiB VMEM -> ~16 MiB blocks
        per_buf = 16 * 1024 * 1024
    return per_buf, vmem


def _apply_affine(x2d: jnp.ndarray, scale: jnp.ndarray, offset: jnp.ndarray,
                  out_dtype) -> jnp.ndarray:
    """Run the affine kernel on (B, D) data with per-feature (D,) stats."""
    B, D = x2d.shape
    scale2 = scale.reshape(1, D).astype(jnp.float32)
    offset2 = offset.reshape(1, D).astype(jnp.float32)

    bytes_in = jnp.dtype(x2d.dtype).itemsize
    bytes_out = jnp.dtype(out_dtype).itemsize
    bytes_max = max(bytes_in, bytes_out, 1)

    per_buf, vmem_cap = _vmem_caps()

    # ---- feature (lane) tile: full D if 8 rows fit, else a multiple of 128 ----
    if 8 * D * bytes_max <= per_buf:
        td = D                                    # full feature dim (always legal)
    else:
        td = max(128, (per_buf // (8 * bytes_max)) // 128 * 128)

    # ---- batch (sublane) tile: largest multiple of 8 under the byte cap ----
    max_rows = max(8, (per_buf // (td * bytes_max)) // 8 * 8)
    if B > max_rows:
        tb = max_rows                             # multiple of 8; last block ragged
    else:
        tb = B                                    # block == full batch dim (legal)
        # Never emit grid=(1,1) for non-tiny arrays: >=2 batch blocks lets
        # v7x's two TensorCores shard and overlaps read/write DMA with compute.
        if td == D and B * D * bytes_max >= _MIN_SPLIT_BYTES and B >= 16:
            n_blk = 4 if B >= 32 else 2
            tb = min(max_rows, _round_up(pl.cdiv(B, n_blk), 8))

    grid = (pl.cdiv(B, tb), pl.cdiv(D, td))

    # Scoped-VMEM limit derived from the actual double-buffered footprint.
    blk_bytes = tb * td * (bytes_in + bytes_out)
    stat_bytes = 2 * 8 * _round_up(td, 128) * 4   # two (1, td) f32 rows, padded
    vmem_limit = 2 * blk_bytes + 2 * stat_bytes + (8 << 20)  # + compiler scratch
    vmem_limit = max(16 << 20, min(int(vmem_limit), vmem_cap - (4 << 20)))

    return pl.pallas_call(
        _affine_kernel,
        out_shape=jax.ShapeDtypeStruct((B, D), out_dtype),
        grid=grid,
        in_specs=[
            pl.BlockSpec((tb, td), lambda i, j: (i, j)),
            pl.BlockSpec((1, td), lambda i, j: (0, j)),
            pl.BlockSpec((1, td), lambda i, j: (0, j)),
        ],
        out_specs=pl.BlockSpec((tb, td), lambda i, j: (i, j)),
        compiler_params=pltpu.CompilerParams(
            dimension_semantics=("parallel", "parallel"),  # megacore on v7x
            vmem_limit_bytes=vmem_limit,
        ),
    )(x2d, scale2, offset2)


# ------------------------------ Normalizer ---------------------------------

class Normalizer:
    """JAX/Pallas port of the PyTorch Normalizer forward pass."""

    def __init__(self, stats, normalization_mode='min_max', control_mode='delta'):
        assert control_mode in ['delta', 'pos']
        assert normalization_mode in ['min_max', 'mean_std']
        self.control_mode = control_mode
        self.normalization_mode = normalization_mode
        # stats: key -> {'min','max'} or {'mean','std'}, each a (D,) vector.
        self.stats = {
            k: {s: jnp.asarray(v, dtype=jnp.float32) for s, v in d.items()}
            for k, d in stats.items()
        }
        # TODO(synk): nn.ParameterDict / requires_grad plumbing has no Pallas
        # equivalent; stats are plain (frozen) device arrays here.

    def keys(self):
        return self.stats.keys()

    @property
    def stats_dict(self):
        return {k: {s: np.asarray(v) for s, v in d.items()}
                for k, d in self.stats.items()}

    # -- scale/offset precompute (O(D), keeps the divide off the hot path) --
    def _scale_offset(self, key: str, forward: bool):
        s = self.stats[key]
        if self.normalization_mode == 'min_max':
            lo, hi = s['min'], s['max']
            rng = hi - lo              # NOTE: max==min -> inf/nan, same as torch ref
            if forward:
                scale = 2.0 / rng
                offset = -2.0 * lo / rng - 1.0
            else:
                scale = 0.5 * rng
                offset = 0.5 * rng + lo
        else:
            mu, sd = s['mean'], s['std']   # NOTE: std==0 -> inf/nan, same as torch ref
            if forward:
                scale = 1.0 / sd
                offset = -mu / sd
            else:
                scale = sd
                offset = mu
        return scale, offset

    def _run(self, xj: jnp.ndarray, key: str, forward: bool) -> jnp.ndarray:
        orig_shape = xj.shape
        D = int(orig_shape[-1]) if len(orig_shape) > 0 else 1
        x2d = xj.reshape(-1, D)
        B = x2d.shape[0]
        out_dtype = xj.dtype

        scale, offset = self._scale_offset(key, forward)

        # Small-input bypass: launch/pipeline overhead dominates -> let XLA fuse.
        if B * D < _SMALL_BYPASS_ELEMS:
            y2d = (x2d.astype(jnp.float32) * scale[None, :]
                   + offset[None, :]).astype(out_dtype)
            return y2d.reshape(orig_shape)

        # Lane-dense fold: if D % 128 != 0, merge k rows -> one (B//k, k*D) row
        # so stores fill whole 128-lane vregs (no masked partial stores).
        k = 1
        if D % 128 != 0:
            kk = 128 // math.gcd(D, 128)
            if B >= kk:
                k = kk

        if k > 1:
            b_main = (B // k) * k
            x_main = x2d[:b_main].reshape(b_main // k, k * D)
            y_main = _apply_affine(x_main, jnp.tile(scale, k), jnp.tile(offset, k),
                                   out_dtype).reshape(b_main, D)
            if b_main < B:
                # <kk-row ragged tail: trivially small, handle in plain jnp.
                x_tail = x2d[b_main:]
                y_tail = (x_tail.astype(jnp.float32) * scale[None, :]
                          + offset[None, :]).astype(out_dtype)
                y2d = jnp.concatenate([y_main, y_tail], axis=0)
            else:
                y2d = y_main
        else:
            y2d = _apply_affine(x2d, scale, offset, out_dtype)

        return y2d.reshape(orig_shape)

    def _normalize(self, x, key):
        return self._run(x, key, forward=True)

    def _denormalize(self, x, key):
        return self._run(x, key, forward=False)

    def forward(self, x: Union[np.ndarray, jnp.ndarray], key: str,
                forward: bool = True):
        """Normalize or denormalize; returns the same container type as input."""
        numpy_in = isinstance(x, np.ndarray)
        if numpy_in:
            xj = jnp.asarray(x, dtype=jnp.float32)   # mirrors torch.from_numpy(x).float()
        else:
            # dtype-preserving for floating inputs (bf16 in -> bf16 out);
            # compute is always f32 in-register inside the kernel.
            xj = x if jnp.issubdtype(x.dtype, jnp.floating) else x.astype(jnp.float32)

        y = self._normalize(xj, key) if forward else self._denormalize(xj, key)

        if numpy_in:
            return np.asarray(y)
        return y

    def __call__(self, *args, **kwargs):
        return self.forward(*args, **kwargs)

    def get_copy(self):
        return self.__class__(self.stats, self.normalization_mode,
                              control_mode=self.control_mode)


# --------------------------------- main -------------------------------------

if __name__ == "__main__":
    key = jax.random.PRNGKey(0)
    k1, k2, k3 = jax.random.split(key, 3)

    # ------- small action-like case (8 x 32): jnp bypass path ---------------
    B, D = 8, 32
    x = jax.random.normal(k1, (B, D), dtype=jnp.float32) * 3.0 + 1.0
    lo = -5.0 + 0.1 * jnp.arange(D, dtype=jnp.float32)
    hi = 5.0 + 0.2 * jnp.arange(D, dtype=jnp.float32)

    norm_mm = Normalizer({'action': {'min': lo, 'max': hi}},
                         normalization_mode='min_max')
    y = norm_mm(x, 'action', forward=True)
    x_rec = norm_mm(y, 'action', forward=False)
    jax.block_until_ready((y, x_rec))
    ref_y = (x - lo[None, :]) / (hi - lo)[None, :] * 2.0 - 1.0
    assert y.dtype == x.dtype
    assert jnp.allclose(y, ref_y, atol=1e-5, rtol=1e-5)
    assert jnp.allclose(x_rec, x, atol=1e-4, rtol=1e-4)

    # numpy in -> numpy out (mirrors torch/numpy round-trip)
    y_np = norm_mm(np.asarray(x), 'action', forward=True)
    assert isinstance(y_np, np.ndarray)
    assert np.allclose(y_np, np.asarray(ref_y), atol=1e-5)

    # ------- Pallas path: lane-aligned D, forced multi-block grid -----------
    B2, D2 = 2048, 512
    x2 = jax.random.normal(k2, (B2, D2), dtype=jnp.float32) * 2.0 - 0.5
    lo2 = -4.0 + 0.01 * jnp.arange(D2, dtype=jnp.float32)
    hi2 = 4.0 + 0.02 * jnp.arange(D2, dtype=jnp.float32)
    norm_mm2 = Normalizer({'action': {'min': lo2, 'max': hi2}},
                          normalization_mode='min_max')

    y2 = norm_mm2(x2, 'action', forward=True)
    x2_rec = norm_mm2(y2, 'action', forward=False)
    jax.block_until_ready((y2, x2_rec))
    ref_y2 = (x2 - lo2[None, :]) / (hi2 - lo2)[None, :] * 2.0 - 1.0
    assert jnp.allclose(y2, ref_y2, atol=1e-5, rtol=1e-5)
    assert jnp.allclose(x2_rec, x2, atol=1e-4, rtol=1e-4)

    # bf16 I/O preserved (f32 compute in-register, bf16 store)
    x2_bf16 = x2.astype(jnp.bfloat16)
    y2_bf16 = norm_mm2(x2_bf16, 'action', forward=True)
    jax.block_until_ready(y2_bf16)
    assert y2_bf16.dtype == jnp.bfloat16
    assert jnp.allclose(y2_bf16.astype(jnp.float32), ref_y2, atol=5e-2, rtol=5e-2)

    # ------- Pallas path: D % 128 != 0 -> lane-dense fold (+ ragged tail) ---
    D3 = 96
    mu3 = 0.5 * jnp.ones((D3,), dtype=jnp.float32)
    sd3 = 1.0 + 0.05 * jnp.arange(D3, dtype=jnp.float32)
    norm_ms = Normalizer({'obs': {'mean': mu3, 'std': sd3}},
                         normalization_mode='mean_std')

    # fold hit: B divisible by kk
    x3 = jax.random.normal(k3, (1024, D3), dtype=jnp.float32) * 1.5 + 0.2
    z3 = norm_ms(x3, 'obs', forward=True)
    x3_rec = norm_ms(z3, 'obs', forward=False)
    jax.block_until_ready((z3, x3_rec))
    ref_z3 = (x3 - mu3[None, :]) / sd3[None, :]
    assert jnp.allclose(z3, ref_z3, atol=1e-5, rtol=1e-5)
    assert jnp.allclose(x3_rec, x3, atol=1e-4, rtol=1e-4)

    # fold miss: B not divisible by kk -> folded main + jnp tail
    x4 = x3[:1022]
    z4 = norm_ms(x4, 'obs', forward=True)
    jax.block_until_ready(z4)
    assert jnp.allclose(z4, ref_z3[:1022], atol=1e-5, rtol=1e-5)

    print("KERNEL_OK")
</pallas_src>

<mosaic_0001>
module attributes {stable_mosaic.version = 11 : i64} {
  func.func @_affine_kernel(%arg0: i32, %arg1: i32, %arg2: memref<512x512xf32, #tpu.memory_space<vmem>>, %arg3: memref<1x512xf32, #tpu.memory_space<vmem>>, %arg4: memref<1x512xf32, #tpu.memory_space<vmem>>, %arg5: memref<512x512xf32, #tpu.memory_space<vmem>>) attributes {dimension_semantics = [#tpu.dimension_semantics<parallel>, #tpu.dimension_semantics<parallel>], iteration_bounds = array<i64: 4, 1>, scalar_prefetch = 0 : i64, scratch_operands = 0 : i64, tpu.core_type = #tpu.core_type<tc>, window_params = [{transform_indices = @transform_0, window_bounds = array<i64: 512, 512>}, {transform_indices = @transform_1, window_bounds = array<i64: 1, 512>}, {transform_indices = @transform_2, window_bounds = array<i64: 1, 512>}, {transform_indices = @transform_3, window_bounds = array<i64: 512, 512>}]} {
    %c0 = arith.constant 0 : index
    %c0_0 = arith.constant 0 : index
    %0 = vector.load %arg2[%c0, %c0_0] : memref<512x512xf32, #tpu.memory_space<vmem>>, vector<512x512xf32>
    %c0_1 = arith.constant 0 : index
    %c0_2 = arith.constant 0 : index
    %1 = vector.load %arg3[%c0_1, %c0_2] : memref<1x512xf32, #tpu.memory_space<vmem>>, vector<1x512xf32>
    %2 = vector.broadcast %1 : vector<1x512xf32> to vector<512x512xf32>
    %3 = arith.mulf %0, %2 : vector<512x512xf32>
    %c0_3 = arith.constant 0 : index
    %c0_4 = arith.constant 0 : index
    %4 = vector.load %arg4[%c0_3, %c0_4] : memref<1x512xf32, #tpu.memory_space<vmem>>, vector<1x512xf32>
    %5 = vector.broadcast %4 : vector<1x512xf32> to vector<512x512xf32>
    %6 = arith.addf %3, %5 : vector<512x512xf32>
    %c0_5 = arith.constant 0 : index
    %c0_6 = arith.constant 0 : index
    %7 = vector.load %arg5[%c0_5, %c0_6] : memref<512x512xf32, #tpu.memory_space<vmem>>, vector<512x512xf32>
    tpu.vector_store %arg5[%c0_5, %c0_6], %6 {strides = array<i32>} : memref<512x512xf32, #tpu.memory_space<vmem>>, vector<512x512xf32>,
    return
  }
  func.func @transform_0(%arg0: i32, %arg1: i32) -> (i32, i32) {
    %c0_i32 = arith.constant 0 : i32
    return %arg0, %arg1 : i32, i32
  }
  func.func @transform_1(%arg0: i32, %arg1: i32) -> (i32, i32) {
    %c0_i32 = arith.constant 0 : i32
    %c0_i32_0 = arith.constant 0 : i32
    return %c0_i32, %arg1 : i32, i32
  }
  func.func @transform_2(%arg0: i32, %arg1: i32) -> (i32, i32) {
    %c0_i32 = arith.constant 0 : i32
    %c0_i32_0 = arith.constant 0 : i32
    return %c0_i32, %arg1 : i32, i32
  }
  func.func @transform_3(%arg0: i32, %arg1: i32) -> (i32, i32) {
    %c0_i32 = arith.constant 0 : i32
    return %arg0, %arg1 : i32, i32
  }
}

</mosaic_0001>

<llo_original>
// kernel: tpu_custom_call.1
$region0: #{tpu_custom_call.1}
  #allocation0 [shape = 'u32[]', space=smem, size = 0x4, offset = 0x4, fixed_abs, tag = 'smem constant byte address 0x4 - core index']
  #allocation1 [shape = 'u32[144,128]{1,0:T(1,128)}', space=vmem, size = 0x12000, scoped, tag = 'internal scratch']
  %s0 = inlined_call_operand.hbm [shape: f32[2048,512], index: 0, kind: input, shape index: {}]
  %s1 = inlined_call_operand.hbm [shape: f32[1,512], index: 1, kind: input, shape index: {}]
  %s2 = inlined_call_operand.hbm [shape: f32[1,512], index: 2, kind: input, shape index: {}]
  %s3 = inlined_call_operand.hbm [shape: f32[2048,512], index: 3, kind: output, shape index: {}]
  %s4 = sld [smem:[#allocation0]]
  $region57: #{tpu_custom_call.1} parent=0
    _
  %s6 = ssub.s32 1, %s4
  %s7 = scalar_select 0, %s6, %s4
  $region1: #{tpu_custom_call.1} parent=0
    #allocation2 [shape = 'u8[2097152]{0}', space=vmem, size = 0x200000, scoped, tag = 'input window, operand 0']
    #allocation3 [shape = 's32[2]{0}', space=sflag, size = 0x8, scoped, tag = 'scoped memory for tpu_custom_call.1']
    #allocation4 [shape = 's32[2]{0}', space=sflag, size = 0x8, scoped, tag = 'scoped memory for tpu_custom_call.1']
    #allocation5 [shape = 'u8[2048]{0}', space=vmem, size = 0x800, scoped, tag = 'input window, operand 1, single buffered']
    #allocation6 [shape = 's32[1]{0}', space=sflag, size = 0x4, scoped, tag = 'scoped memory for tpu_custom_call.1']
    #allocation7 [shape = 'u8[2048]{0}', space=vmem, size = 0x800, scoped, tag = 'input window, operand 2, single buffered']
    #allocation8 [shape = 'u8[2097152]{0}', space=vmem, size = 0x200000, scoped, tag = 'output window, operand 0']
    %8 = vsyncpa [#allocation3], 0
    %s9 = scalar_lea.sflag [#allocation3], 1
    %10 = vsyncpa %s9, 0
    %11 = vsyncpa [#allocation6], 0
    %12 = vsyncpa [#allocation4], 0
    %s13 = scalar_lea.sflag [#allocation4], 1
    %14 = vsyncpa %s13, 0
    loop: start=0, step=1, limit=6
    $region2: #{tpu_custom_call.1} parent=1 // loop_pre_header
      _
    $region3: #{tpu_custom_call.1} parent=1 // loop_header
      %s16 = sphi 0, %s20
      %p17 = scmp.ge.s32.totalorder %s16, 6
      %s23 = sphi 0, %s35
      %s24 = sphi 0, %s31
      %s25 = sphi 0, %s23
      %s26 = sphi 0, %s24
      %s27 = sphi 0, %s25
      %s28 = sphi 0, %s26
      %s40 = sphi 0, %s42
      %s43 = sphi 0, %s40
      %s44 = sphi 0, %s43
      %s60 = sphi 0, %s44
      %s66 = sphi 0, %s68
      %s69 = sphi 0, %s66
      %s70 = sphi 0, %s69
      %s86 = sphi 0, %s70
      %s92 = sphi 0, %s94
      %s95 = sphi 0, %s92
      %s96 = sphi 0, %s95
      %s112 = sphi 0, %s96
      %s120 = sphi 0, %s122
      %s123 = sphi 0, %s120
      %s124 = sphi 0, %s123
      %s140 = sphi 0, %s124
    $region4: #{tpu_custom_call.1} parent=1 // loop_header_branch
      %19 = sbr.rel (%p17) target = $region8
    $region5: #{tpu_custom_call.1} parent=1 // loop_body
      %s21 = ssub.s32 %s16, 1
      %s22 = ssub.s32 %s16, 2
      %s29 = sadd.s32 1, %s24
      %p30 = scmp.ge.s32.totalorder %s29, 1
      %s31 = scalar_select %p30, 0, %s29
      %s32 = sadd.s32 1, %s23
      %s33 = scalar_select %p30, %s32, %s23
      %p34 = scmp.ge.s32.totalorder %s33, 4
      %s35 = scalar_select %p34, 0, %s33
      %s36 = ssub.s32 %s23, %s35
      %s37 = ssub.s32 %s24, %s31
      %s38 = sor.u32 %s36, %s37
      %p39 = scmp.eq.s32.totalorder %s38, 0
      %s41 = sadd.s32 %s40, 1
      %s42 = scalar_select %p39, %s40, %s41
      %p45 = pneg %p39
      %p46 = scmp.eq.s32.totalorder %s16, 3
      %p47 = por %p45, %p46
      %p48 = scmp.ne.s32.totalorder %s40, %s43
      %p49 = scmp.eq.s32.totalorder %s16, 0
      %p50 = por %p48, %p49
      %p51 = scmp.ne.s32.totalorder %s40, %s43
      %p52 = scmp.eq.s32.totalorder %s21, 3
      %p53 = por %p51, %p52
      %p54 = scmp.ne.s32.totalorder %s43, %s44
      %p55 = scmp.eq.s32.totalorder %s21, 0
      %p56 = por %p54, %p55
      %p57 = scmp.ne.s32.totalorder %s43, %s44
      %p58 = scmp.eq.s32.totalorder %s22, 3
      %p59 = por %p57, %p58
      %p61 = scmp.ne.s32.totalorder %s44, %s60
      %p62 = scmp.eq.s32.totalorder %s22, 0
      %p63 = por %p61, %p62
      %s64 = ssub.s32 %s24, %s31
      %p65 = scmp.eq.s32.totalorder %s64, 0
      %s67 = sadd.s32 %s66, 1
      %s68 = scalar_select %p65, %s66, %s67
      %p71 = pneg %p65
      %p72 = scmp.eq.s32.totalorder %s16, 3
      %p73 = por %p71, %p72
      %p74 = scmp.ne.s32.totalorder %s66, %s69
      %p75 = scmp.eq.s32.totalorder %s16, 0
      %p76 = por %p74, %p75
      %p77 = scmp.ne.s32.totalorder %s66, %s69
      %p78 = scmp.eq.s32.totalorder %s21, 3
      %p79 = por %p77, %p78
      %p80 = scmp.ne.s32.totalorder %s69, %s70
      %p81 = scmp.eq.s32.totalorder %s21, 0
      %p82 = por %p80, %p81
      %p83 = scmp.ne.s32.totalorder %s69, %s70
      %p84 = scmp.eq.s32.totalorder %s22, 3
      %p85 = por %p83, %p84
      %p87 = scmp.ne.s32.totalorder %s70, %s86
      %p88 = scmp.eq.s32.totalorder %s22, 0
      %p89 = por %p87, %p88
      %s90 = ssub.s32 %s24, %s31
      %p91 = scmp.eq.s32.totalorder %s90, 0
      %s93 = sadd.s32 %s92, 1
      %s94 = scalar_select %p91, %s92, %s93
      %p97 = pneg %p91
      %p98 = scmp.eq.s32.totalorder %s16, 3
      %p99 = por %p97, %p98
      %p100 = scmp.ne.s32.totalorder %s92, %s95
      %p101 = scmp.eq.s32.totalorder %s16, 0
      %p102 = por %p100, %p101
      %p103 = scmp.ne.s32.totalorder %s92, %s95
      %p104 = scmp.eq.s32.totalorder %s21, 3
      %p105 = por %p103, %p104
      %p106 = scmp.ne.s32.totalorder %s95, %s96
      %p107 = scmp.eq.s32.totalorder %s21, 0
      %p108 = por %p106, %p107
      %p109 = scmp.ne.s32.totalorder %s95, %s96
      %p110 = scmp.eq.s32.totalorder %s22, 3
      %p111 = por %p109, %p110
      %p113 = scmp.ne.s32.totalorder %s96, %s112
      %p114 = scmp.eq.s32.totalorder %s22, 0
      %p115 = por %p113, %p114
      %s116 = ssub.s32 %s23, %s35
      %s117 = ssub.s32 %s24, %s31
      %s118 = sor.u32 %s116, %s117
      %p119 = scmp.eq.s32.totalorder %s118, 0
      %s121 = sadd.s32 %s120, 1
      %s122 = scalar_select %p119, %s120, %s121
      %p125 = pneg %p119
      %p126 = scmp.eq.s32.totalorder %s16, 3
      %p127 = por %p125, %p126
      %p128 = scmp.ne.s32.totalorder %s120, %s123
      %p129 = scmp.eq.s32.totalorder %s16, 0
      %p130 = por %p128, %p129
      %p131 = scmp.ne.s32.totalorder %s120, %s123
      %p132 = scmp.eq.s32.totalorder %s21, 3
      %p133 = por %p131, %p132
      %p134 = scmp.ne.s32.totalorder %s123, %s124
      %p135 = scmp.eq.s32.totalorder %s21, 0
      %p136 = por %p134, %p135
      %p137 = scmp.ne.s32.totalorder %s123, %s124
      %p138 = scmp.eq.s32.totalorder %s22, 3
      %p139 = por %p137, %p138
      %p141 = scmp.ne.s32.totalorder %s124, %s140
      %p142 = scmp.eq.s32.totalorder %s22, 0
      %p143 = por %p141, %p142
      %p144 = scmp.le.s32.totalorder 1, %s16
      %p145 = scmp.lt.s32.totalorder %s16, 5
      %p146 = pnand %p144, %p145
      %p147 = pneg %p146
      // Predicated region
      $region9: #{tpu_custom_call.1} parent=5 // pred_check
        _
      $region10: #{tpu_custom_call.1} parent=5 // pred_check_branch
        %149 = sbr.rel (%p146) target = $region12
      $region11: #{tpu_custom_call.1} parent=5 // pred_region
        %s150 = ssub.s32 %s16, 1
        // Predicated region
        $region13: #{tpu_custom_call.1} parent=11 // pred_check
          %p151 = pneg %p82
        $region14: #{tpu_custom_call.1} parent=11 // pred_check_branch
          %153 = sbr.rel (%p151) target = $region16
        $region15: #{tpu_custom_call.1} parent=11 // pred_region
          %s154 = smul.u32 4, %s26
          %s156 = ssub.s32 64, 64
          %157 = vsyncadd [#allocation6], %s156
          %s158 = smul.addr %s154, 16
          %s159 = scalar_lea.hbm %s1, %s158
          %s161 = sshll.u32 [#allocation5], 4
          %s162 = int_to_ptr.vmem [resolvable:$true] %s161
          %164 = dma.hbm_to_vmem [thread:$0]  %s159, 64, %s162, [#allocation6]
        $region16: #{tpu_custom_call.1} parent=11 // pred_fallthru
          _
        // Predicated region
        $region17: #{tpu_custom_call.1} parent=11 // pred_check
          %p165 = pneg %p108
        $region18: #{tpu_custom_call.1} parent=11 // pred_check_branch
          %167 = sbr.rel (%p165) target = $region20
        $region19: #{tpu_custom_call.1} parent=11 // pred_region
          %s168 = smul.u32 4, %s26
          %s170 = ssub.s32 64, 64
          %171 = vsyncadd [#allocation6], %s170
          %s172 = smul.addr %s168, 16
          %s173 = scalar_lea.hbm %s2, %s172
          %s175 = sshll.u32 [#allocation7], 4
          %s176 = int_to_ptr.vmem [resolvable:$true] %s175
          %178 = dma.hbm_to_vmem [thread:$0]  %s173, 64, %s176, [#allocation6]
        $region20: #{tpu_custom_call.1} parent=11 // pred_fallthru
          _
      $region12: #{tpu_custom_call.1} parent=5 // pred_fallthru
        _
      %p179 = scmp.lt.s32.totalorder %s16, 4
      // Predicated region
      $region21: #{tpu_custom_call.1} parent=5 // pred_check
        %p180 = pneg %p179
      $region22: #{tpu_custom_call.1} parent=5 // pred_check_branch
        %182 = sbr.rel (%p180) target = $region24
      $region23: #{tpu_custom_call.1} parent=5 // pred_region
        // Predicated region
        $region25: #{tpu_custom_call.1} parent=23 // pred_check
          %p183 = pneg %p50
        $region26: #{tpu_custom_call.1} parent=23 // pred_check_branch
          %185 = sbr.rel (%p183) target = $region28
        $region27: #{tpu_custom_call.1} parent=23 // pred_region
          %s186 = sand.u32 %s40, 1
          %s187 = scalar_lea.sflag [#allocation3], %s186
          %s188 = sand.u32 %s40, 1
          %s189 = smul.addr %s188, 2048
          %s190 = scalar_lea.vmem [#allocation2], %s189
          %s191 = smul.u32 64, %s23
          %s192 = smul.u32 4, %s24
          %s194 = ssub.s32 32768, 32768
          %195 = vsyncadd %s187, %s194
          %s196 = smul.addr %s191, 4
          %s197 = sadd.s32 %s192, %s196
          %s198 = smul.addr %s197, 128
          %s199 = scalar_lea.hbm %s0, %s198
          %s200 = sshll.u32 %s190, 4
          %s201 = int_to_ptr.vmem [resolvable:$true] %s200
          %206 = dma.hbm_to_vmem [thread:$0]  %s199, 32768, %s201, %s187, 512, 512, 32
        $region28: #{tpu_custom_call.1} parent=23 // pred_fallthru
          _
      $region24: #{tpu_custom_call.1} parent=5 // pred_fallthru
        _
      %p207 = scmp.le.s32.totalorder 1, %s16
      %p208 = scmp.lt.s32.totalorder %s16, 5
      %p209 = pnand %p207, %p208
      %p210 = pneg %p209
      // Predicated region
      $region29: #{tpu_custom_call.1} parent=5 // pred_check
        _
      $region30: #{tpu_custom_call.1} parent=5 // pred_check_branch
        %212 = sbr.rel (%p209) target = $region32
      $region31: #{tpu_custom_call.1} parent=5 // pred_region
        %s213 = ssub.s32 %s16, 1
        %s214 = sand.u32 %s43, 1
        %s215 = scalar_lea.sflag [#allocation3], %s214
        %s216 = sand.u32 %s43, 1
        %s217 = smul.addr %s216, 2048
        %s218 = scalar_lea.vmem [#allocation2], %s217
        // Predicated region
        $region33: #{tpu_custom_call.1} parent=31 // pred_check
          %p219 = pneg %p56
        $region34: #{tpu_custom_call.1} parent=31 // pred_check_branch
          %221 = sbr.rel (%p219) target = $region36
        $region35: #{tpu_custom_call.1} parent=31 // pred_region
          %222 = dma.done %s215, 32768
        $region36: #{tpu_custom_call.1} parent=31 // pred_fallthru
          _
        // Predicated region
        $region37: #{tpu_custom_call.1} parent=31 // pred_check
          %p223 = pneg %p82
        $region38: #{tpu_custom_call.1} parent=31 // pred_check_branch
          %225 = sbr.rel (%p223) target = $region40
        $region39: #{tpu_custom_call.1} parent=31 // pred_region
          %226 = dma.done [#allocation6], 64
        $region40: #{tpu_custom_call.1} parent=31 // pred_fallthru
          _
        // Predicated region
        $region41: #{tpu_custom_call.1} parent=31 // pred_check
          %p227 = pneg %p108
        $region42: #{tpu_custom_call.1} parent=31 // pred_check_branch
          %229 = sbr.rel (%p227) target = $region44
        $region43: #{tpu_custom_call.1} parent=31 // pred_region
          %230 = dma.done [#allocation6], 64
        $region44: #{tpu_custom_call.1} parent=31 // pred_fallthru
          _
        %s231 = sand.u32 %s43, 1
        %s232 = scalar_lea.sflag [#allocation3], %s231
        %s233 = sand.u32 %s43, 1
        %s234 = smul.addr %s233, 2048
        %s235 = scalar_lea.vmem [#allocation2], %s234
        %p236 = pneg %p56
        %p237 = pneg %p53
        %p238 = pneg %p82
        %p239 = pneg %p79
        %p240 = pneg %p108
        %p241 = pneg %p105
        %p242 = pneg %p136
        %p243 = pneg %p133
        %s244 = sand.u32 %s123, 1
        %s245 = scalar_lea.sflag [#allocation4], %s244
        %s246 = sand.u32 %s123, 1
        %s247 = smul.addr %s246, 2048
        %s248 = scalar_lea.vmem [#allocation8], %s247
        %s249 = smul.u32 64, %s25
        %s250 = smul.u32 4, %s26
        %s251 = smul.u32 4, %s26
        %s252 = smul.u32 4, %s26
        %s253 = smul.u32 64, %s25
        %s254 = smul.u32 4, %s26
        %v255 = vld [vmem:[%s218] sm:$0xff]
        %v256 = vld [vmem:[%s218 + $0x8] sm:$0xff]
        %v257 = vld [vmem:[%s218 + $0x10] sm:$0xff]
        %v258 = vld [vmem:[%s218 + $0x18] sm:$0xff]
        %v259 = vld [vmem:[%s218 + $0x20] sm:$0xff]
        %v260 = vld [vmem:[%s218 + $0x28] sm:$0xff]
        %v261 = vld [vmem:[%s218 + $0x30] sm:$0xff]
        %v262 = vld [vmem:[%s218 + $0x38] sm:$0xff]
        %v263 = vld [vmem:[%s218 + $0x40] sm:$0xff]
        %v264 = vld [vmem:[%s218 + $0x48] sm:$0xff]
        %v265 = vld [vmem:[%s218 + $0x50] sm:$0xff]
        %v266 = vld [vmem:[%s218 + $0x58] sm:$0xff]
        %v267 = vld [vmem:[%s218 + $0x60] sm:$0xff]
        %v268 = vld [vmem:[%s218 + $0x68] sm:$0xff]
        %v269 = vld [vmem:[%s218 + $0x70] sm:$0xff]
        %v270 = vld [vmem:[%s218 + $0x78] sm:$0xff]
        %v271 = vld [vmem:[%s218 + $0x80] sm:$0xff]
        %v272 = vld [vmem:[%s218 + $0x88] sm:$0xff]
        %v273 = vld [vmem:[%s218 + $0x90] sm:$0xff]
        %v274 = vld [vmem:[%s218 + $0x98] sm:$0xff]
        %v275 = vld [vmem:[%s218 + $0xa0] sm:$0xff]
        %v276 = vld [vmem:[%s218 + $0xa8] sm:$0xff]
        %v277 = vld [vmem:[%s218 + $0xb0] sm:$0xff]
        %v278 = vld [vmem:[%s218 + $0xb8] sm:$0xff]
        %v279 = vld [vmem:[%s218 + $0xc0] sm:$0xff]
        %v280 = vld [vmem:[%s218 + $0xc8] sm:$0xff]
        %v281 = vld [vmem:[%s218 + $0xd0] sm:$0xff]
        %v282 = vld [vmem:[%s218 + $0xd8] sm:$0xff]
        %v283 = vld [vmem:[%s218 + $0xe0] sm:$0xff]
        %v284 = vld [vmem:[%s218 + $0xe8] sm:$0xff]
        %v285 = vld [vmem:[%s218 + $0xf0] sm:$0xff]
        %v286 = vld [vmem:[%s218 + $0xf8] sm:$0xff]
        %v287 = vld [vmem:[%s218 + $0x100] sm:$0xff]
        %v288 = vld [vmem:[%s218 + $0x108] sm:$0xff]
        %v289 = vld [vmem:[%s218 + $0x110] sm:$0xff]
        %v290 = vld [vmem:[%s218 + $0x118] sm:$0xff]
        %v291 = vld [vmem:[%s218 + $0x120] sm:$0xff]
        %v292 = vld [vmem:[%s218 + $0x128] sm:$0xff]
        %v293 = vld [vmem:[%s218 + $0x130] sm:$0xff]
        %v294 = vld [vmem:[%s218 + $0x138] sm:$0xff]
        %v295 = vld [vmem:[%s218 + $0x140] sm:$0xff]
        %v296 = vld [vmem:[%s218 + $0x148] sm:$0xff]
        %v297 = vld [vmem:[%s218 + $0x150] sm:$0xff]
        %v298 = vld [vmem:[%s218 + $0x158] sm:$0xff]
        %v299 = vld [vmem:[%s218 + $0x160] sm:$0xff]
        %v300 = vld [vmem:[%s218 + $0x168] sm:$0xff]
        %v301 = vld [vmem:[%s218 + $0x170] sm:$0xff]
        %v302 = vld [vmem:[%s218 + $0x178] sm:$0xff]
        %v303 = vld [vmem:[%s218 + $0x180] sm:$0xff]
        %v304 = vld [vmem:[%s218 + $0x188] sm:$0xff]
        %v305 = vld [vmem:[%s218 + $0x190] sm:$0xff]
        %v306 = vld [vmem:[%s218 + $0x198] sm:$0xff]
        %v307 = vld [vmem:[%s218 + $0x1a0] sm:$0xff]
        %v308 = vld [vmem:[%s218 + $0x1a8] sm:$0xff]
        %v309 = vld [vmem:[%s218 + $0x1b0] sm:$0xff]
        %v310 = vld [vmem:[%s218 + $0x1b8] sm:$0xff]
        %v311 = vld [vmem:[%s218 + $0x1c0] sm:$0xff]
        %v312 = vld [vmem:[%s218 + $0x1c8] sm:$0xff]
        %v313 = vld [vmem:[%s218 + $0x1d0] sm:$0xff]
        %v314 = vld [vmem:[%s218 + $0x1d8] sm:$0xff]
        %v315 = vld [vmem:[%s218 + $0x1e0] sm:$0xff]
        %v316 = vld [vmem:[%s218 + $0x1e8] sm:$0xff]
        %v317 = vld [vmem:[%s218 + $0x1f0] sm:$0xff]
        %v318 = vld [vmem:[%s218 + $0x1f8] sm:$0xff]
        %v319 = vld [vmem:[%s218 + $0x200] sm:$0xff]
        %v320 = vld [vmem:[%s218 + $0x208] sm:$0xff]
        %v321 = vld [vmem:[%s218 + $0x210] sm:$0xff]
        %v322 = vld [vmem:[%s218 + $0x218] sm:$0xff]
        %v323 = vld [vmem:[%s218 + $0x220] sm:$0xff]
        %v324 = vld [vmem:[%s218 + $0x228] sm:$0xff]
        %v325 = vld [vmem:[%s218 + $0x230] sm:$0xff]
        %v326 = vld [vmem:[%s218 + $0x238] sm:$0xff]
        %v327 = vld [vmem:[%s218 + $0x240] sm:$0xff]
        %v328 = vld [vmem:[%s218 + $0x248] sm:$0xff]
        %v329 = vld [vmem:[%s218 + $0x250] sm:$0xff]
        %v330 = vld [vmem:[%s218 + $0x258] sm:$0xff]
        %v331 = vld [vmem:[%s218 + $0x260] sm:$0xff]
        %v332 = vld [vmem:[%s218 + $0x268] sm:$0xff]
        %v333 = vld [vmem:[%s218 + $0x270] sm:$0xff]
        %v334 = vld [vmem:[%s218 + $0x278] sm:$0xff]
        %v335 = vld [vmem:[%s218 + $0x280] sm:$0xff]
        %v336 = vld [vmem:[%s218 + $0x288] sm:$0xff]
        %v337 = vld [vmem:[%s218 + $0x290] sm:$0xff]
        %v338 = vld [vmem:[%s218 + $0x298] sm:$0xff]
        %v339 = vld [vmem:[%s218 + $0x2a0] sm:$0xff]
        %v340 = vld [vmem:[%s218 + $0x2a8] sm:$0xff]
        %v341 = vld [vmem:[%s218 + $0x2b0] sm:$0xff]
        %v342 = vld [vmem:[%s218 + $0x2b8] sm:$0xff]
        %v343 = vld [vmem:[%s218 + $0x2c0] sm:$0xff]
        %v344 = vld [vmem:[%s218 + $0x2c8] sm:$0xff]
        %v345 = vld [vmem:[%s218 + $0x2d0] sm:$0xff]
        %v346 = vld [vmem:[%s218 + $0x2d8] sm:$0xff]
        %v347 = vld [vmem:[%s218 + $0x2e0] sm:$0xff]
        %v348 = vld [vmem:[%s218 + $0x2e8] sm:$0xff]
        %v349 = vld [vmem:[%s218 + $0x2f0] sm:$0xff]
        %v350 = vld [vmem:[%s218 + $0x2f8] sm:$0xff]
        %v351 = vld [vmem:[%s218 + $0x300] sm:$0xff]
        %v352 = vld [vmem:[%s218 + $0x308] sm:$0xff]
        %v353 = vld [vmem:[%s218 + $0x310] sm:$0xff]
        %v354 = vld [vmem:[%s218 + $0x318] sm:$0xff]
        %v355 = vld [vmem:[%s218 + $0x320] sm:$0xff]
        %v356 = vld [vmem:[%s218 + $0x328] sm:$0xff]
        %v357 = vld [vmem:[%s218 + $0x330] sm:$0xff]
        %v358 = vld [vmem:[%s218 + $0x338] sm:$0xff]
        %v359 = vld [vmem:[%s218 + $0x340] sm:$0xff]
        %v360 = vld [vmem:[%s218 + $0x348] sm:$0xff]
        %v361 = vld [vmem:[%s218 + $0x350] sm:$0xff]
        %v362 = vld [vmem:[%s218 + $0x358] sm:$0xff]
        %v363 = vld [vmem:[%s218 + $0x360] sm:$0xff]
        %v364 = vld [vmem:[%s218 + $0x368] sm:$0xff]
        %v365 = vld [vmem:[%s218 + $0x370] sm:$0xff]
        %v366 = vld [vmem:[%s218 + $0x378] sm:$0xff]
        %v367 = vld [vmem:[%s218 + $0x380] sm:$0xff]
        %v368 = vld [vmem:[%s218 + $0x388] sm:$0xff]
        %v369 = vld [vmem:[%s218 + $0x390] sm:$0xff]
        %v370 = vld [vmem:[%s218 + $0x398] sm:$0xff]
        %v371 = vld [vmem:[%s218 + $0x3a0] sm:$0xff]
        %v372 = vld [vmem:[%s218 + $0x3a8] sm:$0xff]
        %v373 = vld [vmem:[%s218 + $0x3b0] sm:$0xff]
        %v374 = vld [vmem:[%s218 + $0x3b8] sm:$0xff]
        %v375 = vld [vmem:[%s218 + $0x3c0] sm:$0xff]
        %v376 = vld [vmem:[%s218 + $0x3c8] sm:$0xff]
        %v377 = vld [vmem:[%s218 + $0x3d0] sm:$0xff]
        %v378 = vld [vmem:[%s218 + $0x3d8] sm:$0xff]
        %v379 = vld [vmem:[%s218 + $0x3e0] sm:$0xff]
        %v380 = vld [vmem:[%s218 + $0x3e8] sm:$0xff]
        %v381 = vld [vmem:[%s218 + $0x3f0] sm:$0xff]
        %v382 = vld [vmem:[%s218 + $0x3f8] sm:$0xff]
        %v383 = vld [vmem:[%s218 + $0x400] sm:$0xff]
        %v384 = vld [vmem:[%s218 + $0x408] sm:$0xff]
        %v385 = vld [vmem:[%s218 + $0x410] sm:$0xff]
        %v386 = vld [vmem:[%s218 + $0x418] sm:$0xff]
        %v387 = vld [vmem:[%s218 + $0x420] sm:$0xff]
        %v388 = vld [vmem:[%s218 + $0x428] sm:$0xff]
        %v389 = vld [vmem:[%s218 + $0x430] sm:$0xff]
        %v390 = vld [vmem:[%s218 + $0x438] sm:$0xff]
        %v391 = vld [vmem:[%s218 + $0x440] sm:$0xff]
        %v392 = vld [vmem:[%s218 + $0x448] sm:$0xff]
        %v393 = vld [vmem:[%s218 + $0x450] sm:$0xff]
        %v394 = vld [vmem:[%s218 + $0x458] sm:$0xff]
        %v395 = vld [vmem:[%s218 + $0x460] sm:$0xff]
        %v396 = vld [vmem:[%s218 + $0x468] sm:$0xff]
        %v397 = vld [vmem:[%s218 + $0x470] sm:$0xff]
        %v398 = vld [vmem:[%s218 + $0x478] sm:$0xff]
        %v399 = vld [vmem:[%s218 + $0x480] sm:$0xff]
        %v400 = vld [vmem:[%s218 + $0x488] sm:$0xff]
        %v401 = vld [vmem:[%s218 + $0x490] sm:$0xff]
        %v402 = vld [vmem:[%s218 + $0x498] sm:$0xff]
        %v403 = vld [vmem:[%s218 + $0x4a0] sm:$0xff]
        %v404 = vld [vmem:[%s218 + $0x4a8] sm:$0xff]
        %v405 = vld [vmem:[%s218 + $0x4b0] sm:$0xff]
        %v406 = vld [vmem:[%s218 + $0x4b8] sm:$0xff]
        %v407 = vld [vmem:[%s218 + $0x4c0] sm:$0xff]
        %v408 = vld [vmem:[%s218 + $0x4c8] sm:$0xff]
        %v409 = vld [vmem:[%s218 + $0x4d0] sm:$0xff]
        %v410 = vld [vmem:[%s218 + $0x4d8] sm:$0xff]
        %v411 = vld [vmem:[%s218 + $0x4e0] sm:$0xff]
        %v412 = vld [vmem:[%s218 + $0x4e8] sm:$0xff]
        %v413 = vld [vmem:[%s218 + $0x4f0] sm:$0xff]
        %v414 = vld [vmem:[%s218 + $0x4f8] sm:$0xff]
        %v415 = vld [vmem:[%s218 + $0x500] sm:$0xff]
        %v416 = vld [vmem:[%s218 + $0x508] sm:$0xff]
        %v417 = vld [vmem:[%s218 + $0x510] sm:$0xff]
        %v418 = vld [vmem:[%s218 + $0x518] sm:$0xff]
        %v419 = vld [vmem:[%s218 + $0x520] sm:$0xff]
        %v420 = vld [vmem:[%s218 + $0x528] sm:$0xff]
        %v421 = vld [vmem:[%s218 + $0x530] sm:$0xff]
        %v422 = vld [vmem:[%s218 + $0x538] sm:$0xff]
        %v423 = vld [vmem:[%s218 + $0x540] sm:$0xff]
        %v424 = vld [vmem:[%s218 + $0x548] sm:$0xff]
        %v425 = vld [vmem:[%s218 + $0x550] sm:$0xff]
        %v426 = vld [vmem:[%s218 + $0x558] sm:$0xff]
        %v427 = vld [vmem:[%s218 + $0x560] sm:$0xff]
        %v428 = vld [vmem:[%s218 + $0x568] sm:$0xff]
        %v429 = vld [vmem:[%s218 + $0x570] sm:$0xff]
        %v430 = vld [vmem:[%s218 + $0x578] sm:$0xff]
        %v431 = vld [vmem:[%s218 + $0x580] sm:$0xff]
        %v432 = vld [vmem:[%s218 + $0x588] sm:$0xff]
        %v433 = vld [vmem:[%s218 + $0x590] sm:$0xff]
        %v434 = vld [vmem:[%s218 + $0x598] sm:$0xff]
        %v435 = vld [vmem:[%s218 + $0x5a0] sm:$0xff]
        %v436 = vld [vmem:[%s218 + $0x5a8] sm:$0xff]
        %v437 = vld [vmem:[%s218 + $0x5b0] sm:$0xff]
        %v438 = vld [vmem:[%s218 + $0x5b8] sm:$0xff]
        %v439 = vld [vmem:[%s218 + $0x5c0] sm:$0xff]
        %v440 = vld [vmem:[%s218 + $0x5c8] sm:$0xff]
        %v441 = vld [vmem:[%s218 + $0x5d0] sm:$0xff]
        %v442 = vld [vmem:[%s218 + $0x5d8] sm:$0xff]
        %v443 = vld [vmem:[%s218 + $0x5e0] sm:$0xff]
        %v444 = vld [vmem:[%s218 + $0x5e8] sm:$0xff]
        %v445 = vld [vmem:[%s218 + $0x5f0] sm:$0xff]
        %v446 = vld [vmem:[%s218 + $0x5f8] sm:$0xff]
        %v447 = vld [vmem:[%s218 + $0x600] sm:$0xff]
        %v448 = vld [vmem:[%s218 + $0x608] sm:$0xff]
        %v449 = vld [vmem:[%s218 + $0x610] sm:$0xff]
        %v450 = vld [vmem:[%s218 + $0x618] sm:$0xff]
        %v451 = vld [vmem:[%s218 + $0x620] sm:$0xff]
        %v452 = vld [vmem:[%s218 + $0x628] sm:$0xff]
        %v453 = vld [vmem:[%s218 + $0x630] sm:$0xff]
        %v454 = vld [vmem:[%s218 + $0x638] sm:$0xff]
        %v455 = vld [vmem:[%s218 + $0x640] sm:$0xff]
        %v456 = vld [vmem:[%s218 + $0x648] sm:$0xff]
        %v457 = vld [vmem:[%s218 + $0x650] sm:$0xff]
        %v458 = vld [vmem:[%s218 + $0x658] sm:$0xff]
        %v459 = vld [vmem:[%s218 + $0x660] sm:$0xff]
        %v460 = vld [vmem:[%s218 + $0x668] sm:$0xff]
        %v461 = vld [vmem:[%s218 + $0x670] sm:$0xff]
        %v462 = vld [vmem:[%s218 + $0x678] sm:$0xff]
        %v463 = vld [vmem:[%s218 + $0x680] sm:$0xff]
        %v464 = vld [vmem:[%s218 + $0x688] sm:$0xff]
        %v465 = vld [vmem:[%s218 + $0x690] sm:$0xff]
        %v466 = vld [vmem:[%s218 + $0x698] sm:$0xff]
        %v467 = vld [vmem:[%s218 + $0x6a0] sm:$0xff]
        %v468 = vld [vmem:[%s218 + $0x6a8] sm:$0xff]
        %v469 = vld [vmem:[%s218 + $0x6b0] sm:$0xff]
        %v470 = vld [vmem:[%s218 + $0x6b8] sm:$0xff]
        %v471 = vld [vmem:[%s218 + $0x6c0] sm:$0xff]
        %v472 = vld [vmem:[%s218 + $0x6c8] sm:$0xff]
        %v473 = vld [vmem:[%s218 + $0x6d0] sm:$0xff]
        %v474 = vld [vmem:[%s218 + $0x6d8] sm:$0xff]
        %v475 = vld [vmem:[%s218 + $0x6e0] sm:$0xff]
        %v476 = vld [vmem:[%s218 + $0x6e8] sm:$0xff]
        %v477 = vld [vmem:[%s218 + $0x6f0] sm:$0xff]
        %v478 = vld [vmem:[%s218 + $0x6f8] sm:$0xff]
        %v479 = vld [vmem:[%s218 + $0x700] sm:$0xff]
        %v480 = vld [vmem:[%s218 + $0x708] sm:$0xff]
        %v481 = vld [vmem:[%s218 + $0x710] sm:$0xff]
        %v482 = vld [vmem:[%s218 + $0x718] sm:$0xff]
        %v483 = vld [vmem:[%s218 + $0x720] sm:$0xff]
        %v484 = vld [vmem:[%s218 + $0x728] sm:$0xff]
        %v485 = vld [vmem:[%s218 + $0x730] sm:$0xff]
        %v486 = vld [vmem:[%s218 + $0x738] sm:$0xff]
        %v487 = vld [vmem:[%s218 + $0x740] sm:$0xff]
        %v488 = vld [vmem:[%s218 + $0x748] sm:$0xff]
        %v489 = vld [vmem:[%s218 + $0x750] sm:$0xff]
        %v490 = vld [vmem:[%s218 + $0x758] sm:$0xff]
        %v491 = vld [vmem:[%s218 + $0x760] sm:$0xff]
        %v492 = vld [vmem:[%s218 + $0x768] sm:$0xff]
        %v493 = vld [vmem:[%s218 + $0x770] sm:$0xff]
        %v494 = vld [vmem:[%s218 + $0x778] sm:$0xff]
        %v495 = vld [vmem:[%s218 + $0x780] sm:$0xff]
        %v496 = vld [vmem:[%s218 + $0x788] sm:$0xff]
        %v497 = vld [vmem:[%s218 + $0x790] sm:$0xff]
        %v498 = vld [vmem:[%s218 + $0x798] sm:$0xff]
        %v499 = vld [vmem:[%s218 + $0x7a0] sm:$0xff]
        %v500 = vld [vmem:[%s218 + $0x7a8] sm:$0xff]
        %v501 = vld [vmem:[%s218 + $0x7b0] sm:$0xff]
        %v502 = vld [vmem:[%s218 + $0x7b8] sm:$0xff]
        %v503 = vld [vmem:[%s218 + $0x7c0] sm:$0xff]
        %v504 = vld [vmem:[%s218 + $0x7c8] sm:$0xff]
        %v505 = vld [vmem:[%s218 + $0x7d0] sm:$0xff]
        %v506 = vld [vmem:[%s218 + $0x7d8] sm:$0xff]
        %v507 = vld [vmem:[%s218 + $0x7e0] sm:$0xff]
        %v508 = vld [vmem:[%s218 + $0x7e8] sm:$0xff]
        %v509 = vld [vmem:[%s218 + $0x7f0] sm:$0xff]
        %v510 = vld [vmem:[%s218 + $0x7f8] sm:$0xff]
        %v511 = vld [vmem:[#allocation5] sm:$0xf]
        %v513 = vlaneseq
        %v514 = vshrl.u32 %v513, 7
        %v515 = vsub.s32 0, %v514
        %v516 = vrot.slane %v511, %v515
        %v517 = vlaneseq
        %v518 = vshrl.u32 %v517, 7
        %v519 = vsub.s32 1, %v518
        %v520 = vrot.slane %v511, %v519
        %v521 = vlaneseq
        %v522 = vshrl.u32 %v521, 7
        %v523 = vsub.s32 2, %v522
        %v524 = vrot.slane %v511, %v523
        %v525 = vlaneseq
        %v526 = vshrl.u32 %v525, 7
        %v527 = vsub.s32 3, %v526
        %v528 = vrot.slane %v511, %v527
        %v533 = vmul.f32 %v255, %v516
        %v534 = vmul.f32 %v256, %v520
        %v535 = vmul.f32 %v257, %v524
        %v536 = vmul.f32 %v258, %v528
        %v537 = vmul.f32 %v259, %v516
        %v538 = vmul.f32 %v260, %v520
        %v539 = vmul.f32 %v261, %v524
        %v540 = vmul.f32 %v262, %v528
        %v541 = vmul.f32 %v263, %v516
        %v542 = vmul.f32 %v264, %v520
        %v543 = vmul.f32 %v265, %v524
        %v544 = vmul.f32 %v266, %v528
        %v545 = vmul.f32 %v267, %v516
        %v546 = vmul.f32 %v268, %v520
        %v547 = vmul.f32 %v269, %v524
        %v548 = vmul.f32 %v270, %v528
        %v549 = vmul.f32 %v271, %v516
        %v550 = vmul.f32 %v272, %v520
        %v551 = vmul.f32 %v273, %v524
        %v552 = vmul.f32 %v274, %v528
        %v553 = vmul.f32 %v275, %v516
        %v554 = vmul.f32 %v276, %v520
        %v555 = vmul.f32 %v277, %v524
        %v556 = vmul.f32 %v278, %v528
        %v557 = vmul.f32 %v279, %v516
        %v558 = vmul.f32 %v280, %v520
        %v559 = vmul.f32 %v281, %v524
        %v560 = vmul.f32 %v282, %v528
        %v561 = vmul.f32 %v283, %v516
        %v562 = vmul.f32 %v284, %v520
        %v563 = vmul.f32 %v285, %v524
        %v564 = vmul.f32 %v286, %v528
        %v565 = vmul.f32 %v287, %v516
        %v566 = vmul.f32 %v288, %v520
        %v567 = vmul.f32 %v289, %v524
        %v568 = vmul.f32 %v290, %v528
        %v569 = vmul.f32 %v291, %v516
        %v570 = vmul.f32 %v292, %v520
        %v571 = vmul.f32 %v293, %v524
        %v572 = vmul.f32 %v294, %v528
        %v573 = vmul.f32 %v295, %v516
        %v574 = vmul.f32 %v296, %v520
        %v575 = vmul.f32 %v297, %v524
        %v576 = vmul.f32 %v298, %v528
        %v577 = vmul.f32 %v299, %v516
        %v578 = vmul.f32 %v300, %v520
        %v579 = vmul.f32 %v301, %v524
        %v580 = vmul.f32 %v302, %v528
        %v581 = vmul.f32 %v303, %v516
        %v582 = vmul.f32 %v304, %v520
        %v583 = vmul.f32 %v305, %v524
        %v584 = vmul.f32 %v306, %v528
        %v585 = vmul.f32 %v307, %v516
        %v586 = vmul.f32 %v308, %v520
        %v587 = vmul.f32 %v309, %v524
        %v588 = vmul.f32 %v310, %v528
        %v589 = vmul.f32 %v311, %v516
        %v590 = vmul.f32 %v312, %v520
        %v591 = vmul.f32 %v313, %v524
        %v592 = vmul.f32 %v314, %v528
        %v593 = vmul.f32 %v315, %v516
        %v594 = vmul.f32 %v316, %v520
        %v595 = vmul.f32 %v317, %v524
        %v596 = vmul.f32 %v318, %v528
        %v597 = vmul.f32 %v319, %v516
        %v598 = vmul.f32 %v320, %v520
        %v599 = vmul.f32 %v321, %v524
        %v600 = vmul.f32 %v322, %v528
        %v601 = vmul.f32 %v323, %v516
        %v602 = vmul.f32 %v324, %v520
        %v603 = vmul.f32 %v325, %v524
        %v604 = vmul.f32 %v326, %v528
        %v605 = vmul.f32 %v327, %v516
        %v606 = vmul.f32 %v328, %v520
        %v607 = vmul.f32 %v329, %v524
        %v608 = vmul.f32 %v330, %v528
        %v609 = vmul.f32 %v331, %v516
        %v610 = vmul.f32 %v332, %v520
        %v611 = vmul.f32 %v333, %v524
        %v612 = vmul.f32 %v334, %v528
        %v613 = vmul.f32 %v335, %v516
        %v614 = vmul.f32 %v336, %v520
        %v615 = vmul.f32 %v337, %v524
        %v616 = vmul.f32 %v338, %v528
        %v617 = vmul.f32 %v339, %v516
        %v618 = vmul.f32 %v340, %v520
        %v619 = vmul.f32 %v341, %v524
        %v620 = vmul.f32 %v342, %v528
        %v621 = vmul.f32 %v343, %v516
        %v622 = vmul.f32 %v344, %v520
        %v623 = vmul.f32 %v345, %v524
        %v624 = vmul.f32 %v346, %v528
        %v625 = vmul.f32 %v347, %v516
        %v626 = vmul.f32 %v348, %v520
        %v627 = vmul.f32 %v349, %v524
        %v628 = vmul.f32 %v350, %v528
        %v629 = vmul.f32 %v351, %v516
        %v630 = vmul.f32 %v352, %v520
        %v631 = vmul.f32 %v353, %v524
        %v632 = vmul.f32 %v354, %v528
        %v633 = vmul.f32 %v355, %v516
        %v634 = vmul.f32 %v356, %v520
        %v635 = vmul.f32 %v357, %v524
        %v636 = vmul.f32 %v358, %v528
        %v637 = vmul.f32 %v359, %v516
        %v638 = vmul.f32 %v360, %v520
        %v639 = vmul.f32 %v361, %v524
        %v640 = vmul.f32 %v362, %v528
        %v641 = vmul.f32 %v363, %v516
        %v642 = vmul.f32 %v364, %v520
        %v643 = vmul.f32 %v365, %v524
        %v644 = vmul.f32 %v366, %v528
        %v645 = vmul.f32 %v367, %v516
        %v646 = vmul.f32 %v368, %v520
        %v647 = vmul.f32 %v369, %v524
        %v648 = vmul.f32 %v370, %v528
        %v649 = vmul.f32 %v371, %v516
        %v650 = vmul.f32 %v372, %v520
        %v651 = vmul.f32 %v373, %v524
        %v652 = vmul.f32 %v374, %v528
        %v653 = vmul.f32 %v375, %v516
        %v654 = vmul.f32 %v376, %v520
        %v655 = vmul.f32 %v377, %v524
        %v656 = vmul.f32 %v378, %v528
        %v657 = vmul.f32 %v379, %v516
        %v658 = vmul.f32 %v380, %v520
        %v659 = vmul.f32 %v381, %v524
        %v660 = vmul.f32 %v382, %v528
        %v661 = vmul.f32 %v383, %v516
        %v662 = vmul.f32 %v384, %v520
        %v663 = vmul.f32 %v385, %v524
        %v664 = vmul.f32 %v386, %v528
        %v665 = vmul.f32 %v387, %v516
        %v666 = vmul.f32 %v388, %v520
        %v667 = vmul.f32 %v389, %v524
        %v668 = vmul.f32 %v390, %v528
        %v669 = vmul.f32 %v391, %v516
        %v670 = vmul.f32 %v392, %v520
        %v671 = vmul.f32 %v393, %v524
        %v672 = vmul.f32 %v394, %v528
        %v673 = vmul.f32 %v395, %v516
        %v674 = vmul.f32 %v396, %v520
        %v675 = vmul.f32 %v397, %v524
        %v676 = vmul.f32 %v398, %v528
        %v677 = vmul.f32 %v399, %v516
        %v678 = vmul.f32 %v400, %v520
        %v679 = vmul.f32 %v401, %v524
        %v680 = vmul.f32 %v402, %v528
        %v681 = vmul.f32 %v403, %v516
        %v682 = vmul.f32 %v404, %v520
        %v683 = vmul.f32 %v405, %v524
        %v684 = vmul.f32 %v406, %v528
        %v685 = vmul.f32 %v407, %v516
        %v686 = vmul.f32 %v408, %v520
        %v687 = vmul.f32 %v409, %v524
        %v688 = vmul.f32 %v410, %v528
        %v689 = vmul.f32 %v411, %v516
        %v690 = vmul.f32 %v412, %v520
        %v691 = vmul.f32 %v413, %v524
        %v692 = vmul.f32 %v414, %v528
        %v693 = vmul.f32 %v415, %v516
        %v694 = vmul.f32 %v416, %v520
        %v695 = vmul.f32 %v417, %v524
        %v696 = vmul.f32 %v418, %v528
        %v697 = vmul.f32 %v419, %v516
        %v698 = vmul.f32 %v420, %v520
        %v699 = vmul.f32 %v421, %v524
        %v700 = vmul.f32 %v422, %v528
        %v701 = vmul.f32 %v423, %v516
        %v702 = vmul.f32 %v424, %v520
        %v703 = vmul.f32 %v425, %v524
        %v704 = vmul.f32 %v426, %v528
        %v705 = vmul.f32 %v427, %v516
        %v706 = vmul.f32 %v428, %v520
        %v707 = vmul.f32 %v429, %v524
        %v708 = vmul.f32 %v430, %v528
        %v709 = vmul.f32 %v431, %v516
        %v710 = vmul.f32 %v432, %v520
        %v711 = vmul.f32 %v433, %v524
        %v712 = vmul.f32 %v434, %v528
        %v713 = vmul.f32 %v435, %v516
        %v714 = vmul.f32 %v436, %v520
        %v715 = vmul.f32 %v437, %v524
        %v716 = vmul.f32 %v438, %v528
        %v717 = vmul.f32 %v439, %v516
        %v718 = vmul.f32 %v440, %v520
        %v719 = vmul.f32 %v441, %v524
        %v720 = vmul.f32 %v442, %v528
        %v721 = vmul.f32 %v443, %v516
        %v722 = vmul.f32 %v444, %v520
        %v723 = vmul.f32 %v445, %v524
        %v724 = vmul.f32 %v446, %v528
        %v725 = vmul.f32 %v447, %v516
        %v726 = vmul.f32 %v448, %v520
        %v727 = vmul.f32 %v449, %v524
        %v728 = vmul.f32 %v450, %v528
        %v729 = vmul.f32 %v451, %v516
        %v730 = vmul.f32 %v452, %v520
        %v731 = vmul.f32 %v453, %v524
        %v732 = vmul.f32 %v454, %v528
        %v733 = vmul.f32 %v455, %v516
        %v734 = vmul.f32 %v456, %v520
        %v735 = vmul.f32 %v457, %v524
        %v736 = vmul.f32 %v458, %v528
        %v737 = vmul.f32 %v459, %v516
        %v738 = vmul.f32 %v460, %v520
        %v739 = vmul.f32 %v461, %v524
        %v740 = vmul.f32 %v462, %v528
        %v741 = vmul.f32 %v463, %v516
        %v742 = vmul.f32 %v464, %v520
        %v743 = vmul.f32 %v465, %v524
        %v744 = vmul.f32 %v466, %v528
        %v745 = vmul.f32 %v467, %v516
        %v746 = vmul.f32 %v468, %v520
        %v747 = vmul.f32 %v469, %v524
        %v748 = vmul.f32 %v470, %v528
        %v749 = vmul.f32 %v471, %v516
        %v750 = vmul.f32 %v472, %v520
        %v751 = vmul.f32 %v473, %v524
        %v752 = vmul.f32 %v474, %v528
        %v753 = vmul.f32 %v475, %v516
        %v754 = vmul.f32 %v476, %v520
        %v755 = vmul.f32 %v477, %v524
        %v756 = vmul.f32 %v478, %v528
        %v757 = vmul.f32 %v479, %v516
        %v758 = vmul.f32 %v480, %v520
        %v759 = vmul.f32 %v481, %v524
        %v760 = vmul.f32 %v482, %v528
        %v761 = vmul.f32 %v483, %v516
        %v762 = vmul.f32 %v484, %v520
        %v763 = vmul.f32 %v485, %v524
        %v764 = vmul.f32 %v486, %v528
        %v765 = vmul.f32 %v487, %v516
        %v766 = vmul.f32 %v488, %v520
        %v767 = vmul.f32 %v489, %v524
        %v768 = vmul.f32 %v490, %v528
        %v769 = vmul.f32 %v491, %v516
        %v770 = vmul.f32 %v492, %v520
        %v771 = vmul.f32 %v493, %v524
        %v772 = vmul.f32 %v494, %v528
        %v773 = vmul.f32 %v495, %v516
        %v774 = vmul.f32 %v496, %v520
        %v775 = vmul.f32 %v497, %v524
        %v776 = vmul.f32 %v498, %v528
        %v777 = vmul.f32 %v499, %v516
        %v778 = vmul.f32 %v500, %v520
        %v779 = vmul.f32 %v501, %v524
        %v780 = vmul.f32 %v502, %v528
        %v781 = vmul.f32 %v503, %v516
        %v782 = vmul.f32 %v504, %v520
        %v783 = vmul.f32 %v505, %v524
        %v784 = vmul.f32 %v506, %v528
        %v785 = vmul.f32 %v507, %v516
        %v786 = vmul.f32 %v508, %v520
        %v787 = vmul.f32 %v509, %v524
        %v788 = vmul.f32 %v510, %v528
        %v789 = vld [vmem:[#allocation7] sm:$0xf]
        %v791 = vlaneseq
        %v792 = vshrl.u32 %v791, 7
        %v793 = vsub.s32 0, %v792
        %v794 = vrot.slane %v789, %v793
        %v795 = vlaneseq
        %v796 = vshrl.u32 %v795, 7
        %v797 = vsub.s32 1, %v796
        %v798 = vrot.slane %v789, %v797
        %v799 = vlaneseq
        %v800 = vshrl.u32 %v799, 7
        %v801 = vsub.s32 2, %v800
        %v802 = vrot.slane %v789, %v801
        %v803 = vlaneseq
        %v804 = vshrl.u32 %v803, 7
        %v805 = vsub.s32 3, %v804
        %v806 = vrot.slane %v789, %v805
        %v811 = vadd.f32 %v533, %v794
        %v812 = vadd.f32 %v534, %v798
        %v813 = vadd.f32 %v535, %v802
        %v814 = vadd.f32 %v536, %v806
        %v815 = vadd.f32 %v537, %v794
        %v816 = vadd.f32 %v538, %v798
        %v817 = vadd.f32 %v539, %v802
        %v818 = vadd.f32 %v540, %v806
        %v819 = vadd.f32 %v541, %v794
        %v820 = vadd.f32 %v542, %v798
        %v821 = vadd.f32 %v543, %v802
        %v822 = vadd.f32 %v544, %v806
        %v823 = vadd.f32 %v545, %v794
        %v824 = vadd.f32 %v546, %v798
        %v825 = vadd.f32 %v547, %v802
        %v826 = vadd.f32 %v548, %v806
        %v827 = vadd.f32 %v549, %v794
        %v828 = vadd.f32 %v550, %v798
        %v829 = vadd.f32 %v551, %v802
        %v830 = vadd.f32 %v552, %v806
        %v831 = vadd.f32 %v553, %v794
        %v832 = vadd.f32 %v554, %v798
        %v833 = vadd.f32 %v555, %v802
        %v834 = vadd.f32 %v556, %v806
        %v835 = vadd.f32 %v557, %v794
        %v836 = vadd.f32 %v558, %v798
        %v837 = vadd.f32 %v559, %v802
        %v838 = vadd.f32 %v560, %v806
        %v839 = vadd.f32 %v561, %v794
        %v840 = vadd.f32 %v562, %v798
        %v841 = vadd.f32 %v563, %v802
        %v842 = vadd.f32 %v564, %v806
        %v843 = vadd.f32 %v565, %v794
        %v844 = vadd.f32 %v566, %v798
        %v845 = vadd.f32 %v567, %v802
        %v846 = vadd.f32 %v568, %v806
        %v847 = vadd.f32 %v569, %v794
        %v848 = vadd.f32 %v570, %v798
        %v849 = vadd.f32 %v571, %v802
        %v850 = vadd.f32 %v572, %v806
        %v851 = vadd.f32 %v573, %v794
        %v852 = vadd.f32 %v574, %v798
        %v853 = vadd.f32 %v575, %v802
        %v854 = vadd.f32 %v576, %v806
        %v855 = vadd.f32 %v577, %v794
        %v856 = vadd.f32 %v578, %v798
        %v857 = vadd.f32 %v579, %v802
        %v858 = vadd.f32 %v580, %v806
        %v859 = vadd.f32 %v581, %v794
        %v860 = vadd.f32 %v582, %v798
        %v861 = vadd.f32 %v583, %v802
        %v862 = vadd.f32 %v584, %v806
        %v863 = vadd.f32 %v585, %v794
        %v864 = vadd.f32 %v586, %v798
        %v865 = vadd.f32 %v587, %v802
        %v866 = vadd.f32 %v588, %v806
        %v867 = vadd.f32 %v589, %v794
        %v868 = vadd.f32 %v590, %v798
        %v869 = vadd.f32 %v591, %v802
        %v870 = vadd.f32 %v592, %v806
        %v871 = vadd.f32 %v593, %v794
        %v872 = vadd.f32 %v594, %v798
        %v873 = vadd.f32 %v595, %v802
        %v874 = vadd.f32 %v596, %v806
        %v875 = vadd.f32 %v597, %v794
        %v876 = vadd.f32 %v598, %v798
        %v877 = vadd.f32 %v599, %v802
        %v878 = vadd.f32 %v600, %v806
        %v879 = vadd.f32 %v601, %v794
        %v880 = vadd.f32 %v602, %v798
        %v881 = vadd.f32 %v603, %v802
        %v882 = vadd.f32 %v604, %v806
        %v883 = vadd.f32 %v605, %v794
        %v884 = vadd.f32 %v606, %v798
        %v885 = vadd.f32 %v607, %v802
        %v886 = vadd.f32 %v608, %v806
        %v887 = vadd.f32 %v609, %v794
        %v888 = vadd.f32 %v610, %v798
        %v889 = vadd.f32 %v611, %v802
        %v890 = vadd.f32 %v612, %v806
        %v891 = vadd.f32 %v613, %v794
        %v892 = vadd.f32 %v614, %v798
        %v893 = vadd.f32 %v615, %v802
        %v894 = vadd.f32 %v616, %v806
        %v895 = vadd.f32 %v617, %v794
        %v896 = vadd.f32 %v618, %v798
        %v897 = vadd.f32 %v619, %v802
        %v898 = vadd.f32 %v620, %v806
        %v899 = vadd.f32 %v621, %v794
        %v900 = vadd.f32 %v622, %v798
        %v901 = vadd.f32 %v623, %v802
        %v902 = vadd.f32 %v624, %v806
        %v903 = vadd.f32 %v625, %v794
        %v904 = vadd.f32 %v626, %v798
        %v905 = vadd.f32 %v627, %v802
        %v906 = vadd.f32 %v628, %v806
        %v907 = vadd.f32 %v629, %v794
        %v908 = vadd.f32 %v630, %v798
        %v909 = vadd.f32 %v631, %v802
        %v910 = vadd.f32 %v632, %v806
        %v911 = vadd.f32 %v633, %v794
        %v912 = vadd.f32 %v634, %v798
        %v913 = vadd.f32 %v635, %v802
        %v914 = vadd.f32 %v636, %v806
        %v915 = vadd.f32 %v637, %v794
        %v916 = vadd.f32 %v638, %v798
        %v917 = vadd.f32 %v639, %v802
        %v918 = vadd.f32 %v640, %v806
        %v919 = vadd.f32 %v641, %v794
        %v920 = vadd.f32 %v642, %v798
        %v921 = vadd.f32 %v643, %v802
        %v922 = vadd.f32 %v644, %v806
        %v923 = vadd.f32 %v645, %v794
        %v924 = vadd.f32 %v646, %v798
        %v925 = vadd.f32 %v647, %v802
        %v926 = vadd.f32 %v648, %v806
        %v927 = vadd.f32 %v649, %v794
        %v928 = vadd.f32 %v650, %v798
        %v929 = vadd.f32 %v651, %v802
        %v930 = vadd.f32 %v652, %v806
        %v931 = vadd.f32 %v653, %v794
        %v932 = vadd.f32 %v654, %v798
        %v933 = vadd.f32 %v655, %v802
        %v934 = vadd.f32 %v656, %v806
        %v935 = vadd.f32 %v657, %v794
        %v936 = vadd.f32 %v658, %v798
        %v937 = vadd.f32 %v659, %v802
        %v938 = vadd.f32 %v660, %v806
        %v939 = vadd.f32 %v661, %v794
        %v940 = vadd.f32 %v662, %v798
        %v941 = vadd.f32 %v663, %v802
        %v942 = vadd.f32 %v664, %v806
        %v943 = vadd.f32 %v665, %v794
        %v944 = vadd.f32 %v666, %v798
        %v945 = vadd.f32 %v667, %v802
        %v946 = vadd.f32 %v668, %v806
        %v947 = vadd.f32 %v669, %v794
        %v948 = vadd.f32 %v670, %v798
        %v949 = vadd.f32 %v671, %v802
        %v950 = vadd.f32 %v672, %v806
        %v951 = vadd.f32 %v673, %v794
        %v952 = vadd.f32 %v674, %v798
        %v953 = vadd.f32 %v675, %v802
        %v954 = vadd.f32 %v676, %v806
        %v955 = vadd.f32 %v677, %v794
        %v956 = vadd.f32 %v678, %v798
        %v957 = vadd.f32 %v679, %v802
        %v958 = vadd.f32 %v680, %v806
        %v959 = vadd.f32 %v681, %v794
        %v960 = vadd.f32 %v682, %v798
        %v961 = vadd.f32 %v683, %v802
        %v962 = vadd.f32 %v684, %v806
        %v963 = vadd.f32 %v685, %v794
        %v964 = vadd.f32 %v686, %v798
        %v965 = vadd.f32 %v687, %v802
        %v966 = vadd.f32 %v688, %v806
        %v967 = vadd.f32 %v689, %v794
        %v968 = vadd.f32 %v690, %v798
        %v969 = vadd.f32 %v691, %v802
        %v970 = vadd.f32 %v692, %v806
        %v971 = vadd.f32 %v693, %v794
        %v972 = vadd.f32 %v694, %v798
        %v973 = vadd.f32 %v695, %v802
        %v974 = vadd.f32 %v696, %v806
        %v975 = vadd.f32 %v697, %v794
        %v976 = vadd.f32 %v698, %v798
        %v977 = vadd.f32 %v699, %v802
        %v978 = vadd.f32 %v700, %v806
        %v979 = vadd.f32 %v701, %v794
        %v980 = vadd.f32 %v702, %v798
        %v981 = vadd.f32 %v703, %v802
        %v982 = vadd.f32 %v704, %v806
        %v983 = vadd.f32 %v705, %v794
        %v984 = vadd.f32 %v706, %v798
        %v985 = vadd.f32 %v707, %v802
        %v986 = vadd.f32 %v708, %v806
        %v987 = vadd.f32 %v709, %v794
        %v988 = vadd.f32 %v710, %v798
        %v989 = vadd.f32 %v711, %v802
        %v990 = vadd.f32 %v712, %v806
        %v991 = vadd.f32 %v713, %v794
        %v992 = vadd.f32 %v714, %v798
        %v993 = vadd.f32 %v715, %v802
        %v994 = vadd.f32 %v716, %v806
        %v995 = vadd.f32 %v717, %v794
        %v996 = vadd.f32 %v718, %v798
        %v997 = vadd.f32 %v719, %v802
        %v998 = vadd.f32 %v720, %v806
        %v999 = vadd.f32 %v721, %v794
        %v1000 = vadd.f32 %v722, %v798
        %v1001 = vadd.f32 %v723, %v802
        %v1002 = vadd.f32 %v724, %v806
        %v1003 = vadd.f32 %v725, %v794
        %v1004 = vadd.f32 %v726, %v798
        %v1005 = vadd.f32 %v727, %v802
        %v1006 = vadd.f32 %v728, %v806
        %v1007 = vadd.f32 %v729, %v794
        %v1008 = vadd.f32 %v730, %v798
        %v1009 = vadd.f32 %v731, %v802
        %v1010 = vadd.f32 %v732, %v806
        %v1011 = vadd.f32 %v733, %v794
        %v1012 = vadd.f32 %v734, %v798
        %v1013 = vadd.f32 %v735, %v802
        %v1014 = vadd.f32 %v736, %v806
        %v1015 = vadd.f32 %v737, %v794
        %v1016 = vadd.f32 %v738, %v798
        %v1017 = vadd.f32 %v739, %v802
        %v1018 = vadd.f32 %v740, %v806
        %v1019 = vadd.f32 %v741, %v794
        %v1020 = vadd.f32 %v742, %v798
        %v1021 = vadd.f32 %v743, %v802
        %v1022 = vadd.f32 %v744, %v806
        %v1023 = vadd.f32 %v745, %v794
        %v1024 = vadd.f32 %v746, %v798
        %v1025 = vadd.f32 %v747, %v802
        %v1026 = vadd.f32 %v748, %v806
        %v1027 = vadd.f32 %v749, %v794
        %v1028 = vadd.f32 %v750, %v798
        %v1029 = vadd.f32 %v751, %v802
        %v1030 = vadd.f32 %v752, %v806
        %v1031 = vadd.f32 %v753, %v794
        %v1032 = vadd.f32 %v754, %v798
        %v1033 = vadd.f32 %v755, %v802
        %v1034 = vadd.f32 %v756, %v806
        %v1035 = vadd.f32 %v757, %v794
        %v1036 = vadd.f32 %v758, %v798
        %v1037 = vadd.f32 %v759, %v802
        %v1038 = vadd.f32 %v760, %v806
        %v1039 = vadd.f32 %v761, %v794
        %v1040 = vadd.f32 %v762, %v798
        %v1041 = vadd.f32 %v763, %v802
        %v1042 = vadd.f32 %v764, %v806
        %v1043 = vadd.f32 %v765, %v794
        %v1044 = vadd.f32 %v766, %v798
        %v1045 = vadd.f32 %v767, %v802
        %v1046 = vadd.f32 %v768, %v806
        %v1047 = vadd.f32 %v769, %v794
        %v1048 = vadd.f32 %v770, %v798
        %v1049 = vadd.f32 %v771, %v802
        %v1050 = vadd.f32 %v772, %v806
        %v1051 = vadd.f32 %v773, %v794
        %v1052 = vadd.f32 %v774, %v798
        %v1053 = vadd.f32 %v775, %v802
        %v1054 = vadd.f32 %v776, %v806
        %v1055 = vadd.f32 %v777, %v794
        %v1056 = vadd.f32 %v778, %v798
        %v1057 = vadd.f32 %v779, %v802
        %v1058 = vadd.f32 %v780, %v806
        %v1059 = vadd.f32 %v781, %v794
        %v1060 = vadd.f32 %v782, %v798
        %v1061 = vadd.f32 %v783, %v802
        %v1062 = vadd.f32 %v784, %v806
        %v1063 = vadd.f32 %v785, %v794
        %v1064 = vadd.f32 %v786, %v798
        %v1065 = vadd.f32 %v787, %v802
        %v1066 = vadd.f32 %v788, %v806
        %1067 = vst [vmem:[%s248] sm:$0xff] %v811
        %1068 = vst [vmem:[%s248 + $0x8] sm:$0xff] %v812
        %1069 = vst [vmem:[%s248 + $0x10] sm:$0xff] %v813
        %1070 = vst [vmem:[%s248 + $0x18] sm:$0xff] %v814
        %1071 = vst [vmem:[%s248 + $0x20] sm:$0xff] %v815
        %1072 = vst [vmem:[%s248 + $0x28] sm:$0xff] %v816
        %1073 = vst [vmem:[%s248 + $0x30] sm:$0xff] %v817
        %1074 = vst [vmem:[%s248 + $0x38] sm:$0xff] %v818
        %1075 = vst [vmem:[%s248 + $0x40] sm:$0xff] %v819
        %1076 = vst [vmem:[%s248 + $0x48] sm:$0xff] %v820
        %1077 = vst [vmem:[%s248 + $0x50] sm:$0xff] %v821
        %1078 = vst [vmem:[%s248 + $0x58] sm:$0xff] %v822
        %1079 = vst [vmem:[%s248 + $0x60] sm:$0xff] %v823
        %1080 = vst [vmem:[%s248 + $0x68] sm:$0xff] %v824
        %1081 = vst [vmem:[%s248 + $0x70] sm:$0xff] %v825
        %1082 = vst [vmem:[%s248 + $0x78] sm:$0xff] %v826
        %1083 = vst [vmem:[%s248 + $0x80] sm:$0xff] %v827
        %1084 = vst [vmem:[%s248 + $0x88] sm:$0xff] %v828
        %1085 = vst [vmem:[%s248 + $0x90] sm:$0xff] %v829
        %1086 = vst [vmem:[%s248 + $0x98] sm:$0xff] %v830
        %1087 = vst [vmem:[%s248 + $0xa0] sm:$0xff] %v831
        %1088 = vst [vmem:[%s248 + $0xa8] sm:$0xff] %v832
        %1089 = vst [vmem:[%s248 + $0xb0] sm:$0xff] %v833
        %1090 = vst [vmem:[%s248 + $0xb8] sm:$0xff] %v834
        %1091 = vst [vmem:[%s248 + $0xc0] sm:$0xff] %v835
        %1092 = vst [vmem:[%s248 + $0xc8] sm:$0xff] %v836
        %1093 = vst [vmem:[%s248 + $0xd0] sm:$0xff] %v837
        %1094 = vst [vmem:[%s248 + $0xd8] sm:$0xff] %v838
        %1095 = vst [vmem:[%s248 + $0xe0] sm:$0xff] %v839
        %1096 = vst [vmem:[%s248 + $0xe8] sm:$0xff] %v840
        %1097 = vst [vmem:[%s248 + $0xf0] sm:$0xff] %v841
        %1098 = vst [vmem:[%s248 + $0xf8] sm:$0xff] %v842
        %1099 = vst [vmem:[%s248 + $0x100] sm:$0xff] %v843
        %1100 = vst [vmem:[%s248 + $0x108] sm:$0xff] %v844
        %1101 = vst [vmem:[%s248 + $0x110] sm:$0xff] %v845
        %1102 = vst [vmem:[%s248 + $0x118] sm:$0xff] %v846
        %1103 = vst [vmem:[%s248 + $0x120] sm:$0xff] %v847
        %1104 = vst [vmem:[%s248 + $0x128] sm:$0xff] %v848
        %1105 = vst [vmem:[%s248 + $0x130] sm:$0xff] %v849
        %1106 = vst [vmem:[%s248 + $0x138] sm:$0xff] %v850
        %1107 = vst [vmem:[%s248 + $0x140] sm:$0xff] %v851
        %1108 = vst [vmem:[%s248 + $0x148] sm:$0xff] %v852
        %1109 = vst [vmem:[%s248 + $0x150] sm:$0xff] %v853
        %1110 = vst [vmem:[%s248 + $0x158] sm:$0xff] %v854
        %1111 = vst [vmem:[%s248 + $0x160] sm:$0xff] %v855
        %1112 = vst [vmem:[%s248 + $0x168] sm:$0xff] %v856
        %1113 = vst [vmem:[%s248 + $0x170] sm:$0xff] %v857
        %1114 = vst [vmem:[%s248 + $0x178] sm:$0xff] %v858
        %1115 = vst [vmem:[%s248 + $0x180] sm:$0xff] %v859
        %1116 = vst [vmem:[%s248 + $0x188] sm:$0xff] %v860
        %1117 = vst [vmem:[%s248 + $0x190] sm:$0xff] %v861
        %1118 = vst [vmem:[%s248 + $0x198] sm:$0xff] %v862
        %1119 = vst [vmem:[%s248 + $0x1a0] sm:$0xff] %v863
        %1120 = vst [vmem:[%s248 + $0x1a8] sm:$0xff] %v864
        %1121 = vst [vmem:[%s248 + $0x1b0] sm:$0xff] %v865
        %1122 = vst [vmem:[%s248 + $0x1b8] sm:$0xff] %v866
        %1123 = vst [vmem:[%s248 + $0x1c0] sm:$0xff] %v867
        %1124 = vst [vmem:[%s248 + $0x1c8] sm:$0xff] %v868
        %1125 = vst [vmem:[%s248 + $0x1d0] sm:$0xff] %v869
        %1126 = vst [vmem:[%s248 + $0x1d8] sm:$0xff] %v870
        %1127 = vst [vmem:[%s248 + $0x1e0] sm:$0xff] %v871
        %1128 = vst [vmem:[%s248 + $0x1e8] sm:$0xff] %v872
        %1129 = vst [vmem:[%s248 + $0x1f0] sm:$0xff] %v873
        %1130 = vst [vmem:[%s248 + $0x1f8] sm:$0xff] %v874
        %1131 = vst [vmem:[%s248 + $0x200] sm:$0xff] %v875
        %1132 = vst [vmem:[%s248 + $0x208] sm:$0xff] %v876
        %1133 = vst [vmem:[%s248 + $0x210] sm:$0xff] %v877
        %1134 = vst [vmem:[%s248 + $0x218] sm:$0xff] %v878
        %1135 = vst [vmem:[%s248 + $0x220] sm:$0xff] %v879
        %1136 = vst [vmem:[%s248 + $0x228] sm:$0xff] %v880
        %1137 = vst [vmem:[%s248 + $0x230] sm:$0xff] %v881
        %1138 = vst [vmem:[%s248 + $0x238] sm:$0xff] %v882
        %1139 = vst [vmem:[%s248 + $0x240] sm:$0xff] %v883
        %1140 = vst [vmem:[%s248 + $0x248] sm:$0xff] %v884
        %1141 = vst [vmem:[%s248 + $0x250] sm:$0xff] %v885
        %1142 = vst [vmem:[%s248 + $0x258] sm:$0xff] %v886
        %1143 = vst [vmem:[%s248 + $0x260] sm:$0xff] %v887
        %1144 = vst [vmem:[%s248 + $0x268] sm:$0xff] %v888
        %1145 = vst [vmem:[%s248 + $0x270] sm:$0xff] %v889
        %1146 = vst [vmem:[%s248 + $0x278] sm:$0xff] %v890
        %1147 = vst [vmem:[%s248 + $0x280] sm:$0xff] %v891
        %1148 = vst [vmem:[%s248 + $0x288] sm:$0xff] %v892
        %1149 = vst [vmem:[%s248 + $0x290] sm:$0xff] %v893
        %1150 = vst [vmem:[%s248 + $0x298] sm:$0xff] %v894
        %1151 = vst [vmem:[%s248 + $0x2a0] sm:$0xff] %v895
        %1152 = vst [vmem:[%s248 + $0x2a8] sm:$0xff] %v896
        %1153 = vst [vmem:[%s248 + $0x2b0] sm:$0xff] %v897
        %1154 = vst [vmem:[%s248 + $0x2b8] sm:$0xff] %v898
        %1155 = vst [vmem:[%s248 + $0x2c0] sm:$0xff] %v899
        %1156 = vst [vmem:[%s248 + $0x2c8] sm:$0xff] %v900
        %1157 = vst [vmem:[%s248 + $0x2d0] sm:$0xff] %v901
        %1158 = vst [vmem:[%s248 + $0x2d8] sm:$0xff] %v902
        %1159 = vst [vmem:[%s248 + $0x2e0] sm:$0xff] %v903
        %1160 = vst [vmem:[%s248 + $0x2e8] sm:$0xff] %v904
        %1161 = vst [vmem:[%s248 + $0x2f0] sm:$0xff] %v905
        %1162 = vst [vmem:[%s248 + $0x2f8] sm:$0xff] %v906
        %1163 = vst [vmem:[%s248 + $0x300] sm:$0xff] %v907
        %1164 = vst [vmem:[%s248 + $0x308] sm:$0xff] %v908
        %1165 = vst [vmem:[%s248 + $0x310] sm:$0xff] %v909
        %1166 = vst [vmem:[%s248 + $0x318] sm:$0xff] %v910
        %1167 = vst [vmem:[%s248 + $0x320] sm:$0xff] %v911
        %1168 = vst [vmem:[%s248 + $0x328] sm:$0xff] %v912
        %1169 = vst [vmem:[%s248 + $0x330] sm:$0xff] %v913
        %1170 = vst [vmem:[%s248 + $0x338] sm:$0xff] %v914
        %1171 = vst [vmem:[%s248 + $0x340] sm:$0xff] %v915
        %1172 = vst [vmem:[%s248 + $0x348] sm:$0xff] %v916
        %1173 = vst [vmem:[%s248 + $0x350] sm:$0xff] %v917
        %1174 = vst [vmem:[%s248 + $0x358] sm:$0xff] %v918
        %1175 = vst [vmem:[%s248 + $0x360] sm:$0xff] %v919
        %1176 = vst [vmem:[%s248 + $0x368] sm:$0xff] %v920
        %1177 = vst [vmem:[%s248 + $0x370] sm:$0xff] %v921
        %1178 = vst [vmem:[%s248 + $0x378] sm:$0xff] %v922
        %1179 = vst [vmem:[%s248 + $0x380] sm:$0xff] %v923
        %1180 = vst [vmem:[%s248 + $0x388] sm:$0xff] %v924
        %1181 = vst [vmem:[%s248 + $0x390] sm:$0xff] %v925
        %1182 = vst [vmem:[%s248 + $0x398] sm:$0xff] %v926
        %1183 = vst [vmem:[%s248 + $0x3a0] sm:$0xff] %v927
        %1184 = vst [vmem:[%s248 + $0x3a8] sm:$0xff] %v928
        %1185 = vst [vmem:[%s248 + $0x3b0] sm:$0xff] %v929
        %1186 = vst [vmem:[%s248 + $0x3b8] sm:$0xff] %v930
        %1187 = vst [vmem:[%s248 + $0x3c0] sm:$0xff] %v931
        %1188 = vst [vmem:[%s248 + $0x3c8] sm:$0xff] %v932
        %1189 = vst [vmem:[%s248 + $0x3d0] sm:$0xff] %v933
        %1190 = vst [vmem:[%s248 + $0x3d8] sm:$0xff] %v934
        %1191 = vst [vmem:[%s248 + $0x3e0] sm:$0xff] %v935
        %1192 = vst [vmem:[%s248 + $0x3e8] sm:$0xff] %v936
        %1193 = vst [vmem:[%s248 + $0x3f0] sm:$0xff] %v937
        %1194 = vst [vmem:[%s248 + $0x3f8] sm:$0xff] %v938
        %1195 = vst [vmem:[%s248 + $0x400] sm:$0xff] %v939
        %1196 = vst [vmem:[%s248 + $0x408] sm:$0xff] %v940
        %1197 = vst [vmem:[%s248 + $0x410] sm:$0xff] %v941
        %1198 = vst [vmem:[%s248 + $0x418] sm:$0xff] %v942
        %1199 = vst [vmem:[%s248 + $0x420] sm:$0xff] %v943
        %1200 = vst [vmem:[%s248 + $0x428] sm:$0xff] %v944
        %1201 = vst [vmem:[%s248 + $0x430] sm:$0xff] %v945
        %1202 = vst [vmem:[%s248 + $0x438] sm:$0xff] %v946
        %1203 = vst [vmem:[%s248 + $0x440] sm:$0xff] %v947
        %1204 = vst [vmem:[%s248 + $0x448] sm:$0xff] %v948
        %1205 = vst [vmem:[%s248 + $0x450] sm:$0xff] %v949
        %1206 = vst [vmem:[%s248 + $0x458] sm:$0xff] %v950
        %1207 = vst [vmem:[%s248 + $0x460] sm:$0xff] %v951
        %1208 = vst [vmem:[%s248 + $0x468] sm:$0xff] %v952
        %1209 = vst [vmem:[%s248 + $0x470] sm:$0xff] %v953
        %1210 = vst [vmem:[%s248 + $0x478] sm:$0xff] %v954
        %1211 = vst [vmem:[%s248 + $0x480] sm:$0xff] %v955
        %1212 = vst [vmem:[%s248 + $0x488] sm:$0xff] %v956
        %1213 = vst [vmem:[%s248 + $0x490] sm:$0xff] %v957
        %1214 = vst [vmem:[%s248 + $0x498] sm:$0xff] %v958
        %1215 = vst [vmem:[%s248 + $0x4a0] sm:$0xff] %v959
        %1216 = vst [vmem:[%s248 + $0x4a8] sm:$0xff] %v960
        %1217 = vst [vmem:[%s248 + $0x4b0] sm:$0xff] %v961
        %1218 = vst [vmem:[%s248 + $0x4b8] sm:$0xff] %v962
        %1219 = vst [vmem:[%s248 + $0x4c0] sm:$0xff] %v963
        %1220 = vst [vmem:[%s248 + $0x4c8] sm:$0xff] %v964
        %1221 = vst [vmem:[%s248 + $0x4d0] sm:$0xff] %v965
        %1222 = vst [vmem:[%s248 + $0x4d8] sm:$0xff] %v966
        %1223 = vst [vmem:[%s248 + $0x4e0] sm:$0xff] %v967
        %1224 = vst [vmem:[%s248 + $0x4e8] sm:$0xff] %v968
        %1225 = vst [vmem:[%s248 + $0x4f0] sm:$0xff] %v969
        %1226 = vst [vmem:[%s248 + $0x4f8] sm:$0xff] %v970
        %1227 = vst [vmem:[%s248 + $0x500] sm:$0xff] %v971
        %1228 = vst [vmem:[%s248 + $0x508] sm:$0xff] %v972
        %1229 = vst [vmem:[%s248 + $0x510] sm:$0xff] %v973
        %1230 = vst [vmem:[%s248 + $0x518] sm:$0xff] %v974
        %1231 = vst [vmem:[%s248 + $0x520] sm:$0xff] %v975
        %1232 = vst [vmem:[%s248 + $0x528] sm:$0xff] %v976
        %1233 = vst [vmem:[%s248 + $0x530] sm:$0xff] %v977
        %1234 = vst [vmem:[%s248 + $0x538] sm:$0xff] %v978
        %1235 = vst [vmem:[%s248 + $0x540] sm:$0xff] %v979
        %1236 = vst [vmem:[%s248 + $0x548] sm:$0xff] %v980
        %1237 = vst [vmem:[%s248 + $0x550] sm:$0xff] %v981
        %1238 = vst [vmem:[%s248 + $0x558] sm:$0xff] %v982
        %1239 = vst [vmem:[%s248 + $0x560] sm:$0xff] %v983
        %1240 = vst [vmem:[%s248 + $0x568] sm:$0xff] %v984
        %1241 = vst [vmem:[%s248 + $0x570] sm:$0xff] %v985
        %1242 = vst [vmem:[%s248 + $0x578] sm:$0xff] %v986
        %1243 = vst [vmem:[%s248 + $0x580] sm:$0xff] %v987
        %1244 = vst [vmem:[%s248 + $0x588] sm:$0xff] %v988
        %1245 = vst [vmem:[%s248 + $0x590] sm:$0xff] %v989
        %1246 = vst [vmem:[%s248 + $0x598] sm:$0xff] %v990
        %1247 = vst [vmem:[%s248 + $0x5a0] sm:$0xff] %v991
        %1248 = vst [vmem:[%s248 + $0x5a8] sm:$0xff] %v992
        %1249 = vst [vmem:[%s248 + $0x5b0] sm:$0xff] %v993
        %1250 = vst [vmem:[%s248 + $0x5b8] sm:$0xff] %v994
        %1251 = vst [vmem:[%s248 + $0x5c0] sm:$0xff] %v995
        %1252 = vst [vmem:[%s248 + $0x5c8] sm:$0xff] %v996
        %1253 = vst [vmem:[%s248 + $0x5d0] sm:$0xff] %v997
        %1254 = vst [vmem:[%s248 + $0x5d8] sm:$0xff] %v998
        %1255 = vst [vmem:[%s248 + $0x5e0] sm:$0xff] %v999
        %1256 = vst [vmem:[%s248 + $0x5e8] sm:$0xff] %v1000
        %1257 = vst [vmem:[%s248 + $0x5f0] sm:$0xff] %v1001
        %1258 = vst [vmem:[%s248 + $0x5f8] sm:$0xff] %v1002
        %1259 = vst [vmem:[%s248 + $0x600] sm:$0xff] %v1003
        %1260 = vst [vmem:[%s248 + $0x608] sm:$0xff] %v1004
        %1261 = vst [vmem:[%s248 + $0x610] sm:$0xff] %v1005
        %1262 = vst [vmem:[%s248 + $0x618] sm:$0xff] %v1006
        %1263 = vst [vmem:[%s248 + $0x620] sm:$0xff] %v1007
        %1264 = vst [vmem:[%s248 + $0x628] sm:$0xff] %v1008
        %1265 = vst [vmem:[%s248 + $0x630] sm:$0xff] %v1009
        %1266 = vst [vmem:[%s248 + $0x638] sm:$0xff] %v1010
        %1267 = vst [vmem:[%s248 + $0x640] sm:$0xff] %v1011
        %1268 = vst [vmem:[%s248 + $0x648] sm:$0xff] %v1012
        %1269 = vst [vmem:[%s248 + $0x650] sm:$0xff] %v1013
        %1270 = vst [vmem:[%s248 + $0x658] sm:$0xff] %v1014
        %1271 = vst [vmem:[%s248 + $0x660] sm:$0xff] %v1015
        %1272 = vst [vmem:[%s248 + $0x668] sm:$0xff] %v1016
        %1273 = vst [vmem:[%s248 + $0x670] sm:$0xff] %v1017
        %1274 = vst [vmem:[%s248 + $0x678] sm:$0xff] %v1018
        %1275 = vst [vmem:[%s248 + $0x680] sm:$0xff] %v1019
        %1276 = vst [vmem:[%s248 + $0x688] sm:$0xff] %v1020
        %1277 = vst [vmem:[%s248 + $0x690] sm:$0xff] %v1021
        %1278 = vst [vmem:[%s248 + $0x698] sm:$0xff] %v1022
        %1279 = vst [vmem:[%s248 + $0x6a0] sm:$0xff] %v1023
        %1280 = vst [vmem:[%s248 + $0x6a8] sm:$0xff] %v1024
        %1281 = vst [vmem:[%s248 + $0x6b0] sm:$0xff] %v1025
        %1282 = vst [vmem:[%s248 + $0x6b8] sm:$0xff] %v1026
        %1283 = vst [vmem:[%s248 + $0x6c0] sm:$0xff] %v1027
        %1284 = vst [vmem:[%s248 + $0x6c8] sm:$0xff] %v1028
        %1285 = vst [vmem:[%s248 + $0x6d0] sm:$0xff] %v1029
        %1286 = vst [vmem:[%s248 + $0x6d8] sm:$0xff] %v1030
        %1287 = vst [vmem:[%s248 + $0x6e0] sm:$0xff] %v1031
        %1288 = vst [vmem:[%s248 + $0x6e8] sm:$0xff] %v1032
        %1289 = vst [vmem:[%s248 + $0x6f0] sm:$0xff] %v1033
        %1290 = vst [vmem:[%s248 + $0x6f8] sm:$0xff] %v1034
        %1291 = vst [vmem:[%s248 + $0x700] sm:$0xff] %v1035
        %1292 = vst [vmem:[%s248 + $0x708] sm:$0xff] %v1036
        %1293 = vst [vmem:[%s248 + $0x710] sm:$0xff] %v1037
        %1294 = vst [vmem:[%s248 + $0x718] sm:$0xff] %v1038
        %1295 = vst [vmem:[%s248 + $0x720] sm:$0xff] %v1039
        %1296 = vst [vmem:[%s248 + $0x728] sm:$0xff] %v1040
        %1297 = vst [vmem:[%s248 + $0x730] sm:$0xff] %v1041
        %1298 = vst [vmem:[%s248 + $0x738] sm:$0xff] %v1042
        %1299 = vst [vmem:[%s248 + $0x740] sm:$0xff] %v1043
        %1300 = vst [vmem:[%s248 + $0x748] sm:$0xff] %v1044
        %1301 = vst [vmem:[%s248 + $0x750] sm:$0xff] %v1045
        %1302 = vst [vmem:[%s248 + $0x758] sm:$0xff] %v1046
        %1303 = vst [vmem:[%s248 + $0x760] sm:$0xff] %v1047
        %1304 = vst [vmem:[%s248 + $0x768] sm:$0xff] %v1048
        %1305 = vst [vmem:[%s248 + $0x770] sm:$0xff] %v1049
        %1306 = vst [vmem:[%s248 + $0x778] sm:$0xff] %v1050
        %1307 = vst [vmem:[%s248 + $0x780] sm:$0xff] %v1051
        %1308 = vst [vmem:[%s248 + $0x788] sm:$0xff] %v1052
        %1309 = vst [vmem:[%s248 + $0x790] sm:$0xff] %v1053
        %1310 = vst [vmem:[%s248 + $0x798] sm:$0xff] %v1054
        %1311 = vst [vmem:[%s248 + $0x7a0] sm:$0xff] %v1055
        %1312 = vst [vmem:[%s248 + $0x7a8] sm:$0xff] %v1056
        %1313 = vst [vmem:[%s248 + $0x7b0] sm:$0xff] %v1057
        %1314 = vst [vmem:[%s248 + $0x7b8] sm:$0xff] %v1058
        %1315 = vst [vmem:[%s248 + $0x7c0] sm:$0xff] %v1059
        %1316 = vst [vmem:[%s248 + $0x7c8] sm:$0xff] %v1060
        %1317 = vst [vmem:[%s248 + $0x7d0] sm:$0xff] %v1061
        %1318 = vst [vmem:[%s248 + $0x7d8] sm:$0xff] %v1062
        %1319 = vst [vmem:[%s248 + $0x7e0] sm:$0xff] %v1063
        %1320 = vst [vmem:[%s248 + $0x7e8] sm:$0xff] %v1064
        %1321 = vst [vmem:[%s248 + $0x7f0] sm:$0xff] %v1065
        %1322 = vst [vmem:[%s248 + $0x7f8] sm:$0xff] %v1066
        %s1323 = sand.u32 %s123, 1
        %s1324 = scalar_lea.sflag [#allocation4], %s1323
        %s1325 = sand.u32 %s123, 1
        %s1326 = smul.addr %s1325, 2048
        %s1327 = scalar_lea.vmem [#allocation8], %s1326
        // Predicated region
        $region45: #{tpu_custom_call.1} parent=31 // pred_check
          %p1328 = pneg %p133
        $region46: #{tpu_custom_call.1} parent=31 // pred_check_branch
          %1330 = sbr.rel (%p1328) target = $region48
        $region47: #{tpu_custom_call.1} parent=31 // pred_region
          %s1331 = smul.u32 64, %s25
          %s1332 = smul.u32 4, %s26
          %s1334 = ssub.s32 32768, 32768
          %1335 = vsyncadd %s1324, %s1334
          %s1336 = smul.addr %s1331, 4
          %s1337 = sadd.s32 %s1332, %s1336
          %s1338 = smul.addr %s1337, 128
          %s1339 = scalar_lea.hbm %s3, %s1338
          %s1340 = sshll.u32 %s1327, 4
          %s1341 = int_to_ptr.vmem [resolvable:$true] %s1340
          %1346 = dma.vmem_to_hbm [thread:$0]  %s1341, 32768, %s1339, %s1324, 512, 512, 32
        $region48: #{tpu_custom_call.1} parent=31 // pred_fallthru
          _
      $region32: #{tpu_custom_call.1} parent=5 // pred_fallthru
        _
      %p1347 = scmp.le.s32.totalorder 2, %s16
      // Predicated region
      $region49: #{tpu_custom_call.1} parent=5 // pred_check
        %p1348 = pneg %p1347
      $region50: #{tpu_custom_call.1} parent=5 // pred_check_branch
        %1350 = sbr.rel (%p1348) target = $region52
      $region51: #{tpu_custom_call.1} parent=5 // pred_region
        %s1351 = ssub.s32 %s16, 2
        // Predicated region
        $region53: #{tpu_custom_call.1} parent=51 // pred_check
          %p1352 = pneg %p139
        $region54: #{tpu_custom_call.1} parent=51 // pred_check_branch
          %1354 = sbr.rel (%p1352) target = $region56
        $region55: #{tpu_custom_call.1} parent=51 // pred_region
          %s1355 = sand.u32 %s124, 1
          %s1356 = scalar_lea.sflag [#allocation4], %s1355
          %s1357 = sand.u32 %s124, 1
          %s1358 = smul.addr %s1357, 2048
          %s1359 = scalar_lea.vmem [#allocation8], %s1358
          %1360 = dma.done %s1356, 32768
        $region56: #{tpu_custom_call.1} parent=51 // pred_fallthru
          _
      $region52: #{tpu_custom_call.1} parent=5 // pred_fallthru
        _
    $region6: #{tpu_custom_call.1} parent=1 // loop_footer
      %s20 = sadd.s32 1, %s16
    $region7: #{tpu_custom_call.1} parent=1 // loop_footer_branch
      %15 = sbr.rel target = $region3
    $region8: #{tpu_custom_call.1} parent=1 // loop_exit
      _
    %1361 = vsyncpa [#allocation3], 1
    %s1362 = scalar_lea.sflag [#allocation3], 1
    %1363 = vsyncpa %s1362, 1
    %1364 = vsyncpa [#allocation6], 1
    %1365 = vsyncpa [#allocation4], 1
    %s1366 = scalar_lea.sflag [#allocation4], 1
    %1367 = vsyncpa %s1366, 1

</llo_original>
